<compile_context>
chip_gen: v7x
topology: tpu7x:2x2x1
jax: 0.10.0
libtpu: 0.0.40
codegen_flags: <defaults>
</compile_context>

<pallas_src>
import math

import jax
import jax.numpy as jnp
from jax import lax
from jax.experimental import pallas as pl
from jax.experimental.pallas import tpu as pltpu

# ---- hyper-params mirroring the PyTorch script ----
n_embed = 64
n_head = 4
n_layer = 2

text = ('hello world. hello AI. hello future. welcome to the world of AI. '
        'Capital of China is Beijing')
chars = sorted(list(set(text)))
vocab_size = len(chars)

LN_EPS = 1e-5
V_PAD = 128          # padded vocab (embedding rows / lm_head output lanes)


# --------------------------------------------------------------------------
# Shared math helpers
# --------------------------------------------------------------------------
def _layer_norm(y, w, b):
    # single-pass variance: var = E[y^2] - mu^2  (PyTorch LayerNorm, biased var)
    mu = jnp.mean(y, axis=-1, keepdims=True)
    ms = jnp.mean(y * y, axis=-1, keepdims=True)
    var = ms - mu * mu
    return (y - mu) * lax.rsqrt(var + LN_EPS) * w + b


def positional_encoding(seq_len, d_model):
    position = jnp.arange(seq_len, dtype=jnp.float32)[:, None]
    div_term = jnp.exp(jnp.arange(0, d_model, 2, dtype=jnp.float32)
                       * -(math.log(10000.0) / d_model))
    pe = jnp.zeros((seq_len, d_model), jnp.float32)
    pe = pe.at[:, 0::2].set(jnp.sin(position * div_term))
    pe = pe.at[:, 1::2].set(jnp.cos(position * div_term))
    return pe


# --------------------------------------------------------------------------
# Fused Pallas kernel: embedding -> PE -> L transformer blocks -> lm_head
# --------------------------------------------------------------------------
def minigpt_fused_kernel(tok_ref, emb_ref, pe_ref, mask_ref, hmask_ref,
                         wqkvT_ref, bqkv_ref, woT_ref, bo_ref,
                         ln1w_ref, ln1b_ref,
                         w1T_ref, b1_ref, w2T_ref, b2_ref,
                         ln2w_ref, ln2b_ref,
                         lm_wT_ref, lm_b_ref,
                         out_ref):
    BS = tok_ref.shape[0]                 # B*S flattened rows
    Vp, E = emb_ref.shape                 # padded vocab rows, n_embed
    L = wqkvT_ref.shape[0]                # number of transformer blocks
    H = n_head
    bf16 = jnp.bfloat16

    # ---- token embedding: one-hot bf16 MXU matmul + positional encoding ----
    col = lax.broadcasted_iota(jnp.int32, (BS, Vp), 1)
    onehot = jnp.where(tok_ref[...] == col, 1.0, 0.0).astype(bf16)          # (BS, Vp)
    x = jnp.dot(onehot, emb_ref[...],
                preferred_element_type=jnp.float32) + pe_ref[...]           # (BS, E) f32

    mask = mask_ref[...]                  # (H*BS, BS) block-diag causal additive mask
    hmask = hmask_ref[...]                # (H*BS, E)  0/1 head-lane mask

    for l in range(L):                    # static unroll over layers
        # ---- fused QKV projection (all heads; 1/sqrt(hd) folded into Q) ----
        xb = x.astype(bf16)
        qkv = jnp.dot(xb, wqkvT_ref[l],
                      preferred_element_type=jnp.float32) + bqkv_ref[l]     # (BS, 3E) f32
        q = qkv[:, :E]
        k = qkv[:, E:2 * E]
        v = qkv[:, 2 * E:3 * E]

        # ---- all-head scores in ONE matmul: stack Q per head along sublanes,
        #      zero non-head lanes so the E-contraction only sees head h. ----
        q_stacked = (jnp.tile(q, (H, 1)) * hmask).astype(bf16)              # (H*BS, E)
        s = lax.dot_general(q_stacked, k.astype(bf16),
                            (((1,), (1,)), ((), ())),
                            preferred_element_type=jnp.float32) + mask      # (H*BS, BS)

        # ---- one batched softmax over all (head, batch) score rows ----
        s = s - jnp.max(s, axis=-1, keepdims=True)
        p = jnp.exp(s)
        p = p * pl.reciprocal(jnp.sum(p, axis=-1, keepdims=True), approx=True)

        # ---- all-head p @ V in ONE matmul; mask to own head lanes and sum
        #      the H sublane blocks -> head-concatenated (BS, E). ----
        o_stacked = jnp.dot(p.astype(bf16), v.astype(bf16),
                            preferred_element_type=jnp.float32) * hmask     # (H*BS, E)
        o = o_stacked[0:BS]
        for h in range(1, H):
            o = o + o_stacked[h * BS:(h + 1) * BS]                          # (BS, E)

        # ---- fused output projection ----
        attn = jnp.dot(o.astype(bf16), woT_ref[l],
                       preferred_element_type=jnp.float32) + bo_ref[l]

        # ---- residual + LayerNorm 1 (f32 vector math) ----
        y = _layer_norm(x + attn, ln1w_ref[l], ln1b_ref[l])

        # ---- feed-forward (Linear -> ReLU -> Linear) ----
        hmid = jnp.maximum(
            jnp.dot(y.astype(bf16), w1T_ref[l],
                    preferred_element_type=jnp.float32) + b1_ref[l], 0.0)
        ff = jnp.dot(hmid.astype(bf16), w2T_ref[l],
                     preferred_element_type=jnp.float32) + b2_ref[l]

        # ---- residual + LayerNorm 2 ----
        x = _layer_norm(y + ff, ln2w_ref[l], ln2b_ref[l])

    # ---- lm_head: lane-dense (128-wide) padded logits ----
    out_ref[...] = (jnp.dot(x.astype(bf16), lm_wT_ref[...],
                            preferred_element_type=jnp.float32) + lm_b_ref[...])


# --------------------------------------------------------------------------
# One-time parameter packing (fusion / stacking / padding / bf16 weight cast)
# --------------------------------------------------------------------------
def pack_params(params, B, S):
    E, H = n_embed, n_head
    hd = E // H
    scale = 1.0 / math.sqrt(hd)
    bf16 = jnp.bfloat16

    def heads_to_lanes(w):   # (H, E, hd) -> (E, H*hd), head-major lanes
        return jnp.transpose(w, (1, 0, 2)).reshape(E, H * hd)

    def bias_to_lanes(b):    # (H, 1, hd) -> (1, H*hd)
        return jnp.transpose(b, (1, 0, 2)).reshape(1, H * hd)

    wqkvT, bqkv, woT, bo = [], [], [], []
    ln1w, ln1b, w1T, b1, w2T, b2, ln2w, ln2b = ([] for _ in range(8))
    for blk in params['blocks']:
        wq = heads_to_lanes(blk['wqT']) * scale        # fold 1/sqrt(hd) into Q
        wk = heads_to_lanes(blk['wkT'])
        wv = heads_to_lanes(blk['wvT'])
        wqkvT.append(jnp.concatenate([wq, wk, wv], axis=1))          # (E, 3E)
        bq = bias_to_lanes(blk['bq']) * scale
        bk = bias_to_lanes(blk['bk'])
        bv = bias_to_lanes(blk['bv'])
        bqkv.append(jnp.concatenate([bq, bk, bv], axis=1))           # (1, 3E)
        woT.append(blk['woT'].reshape(H * hd, E))                    # (E, E)
        bo.append(blk['bo'])
        ln1w.append(blk['ln1w']); ln1b.append(blk['ln1b'])
        w1T.append(blk['w1T']);   b1.append(blk['b1'])
        w2T.append(blk['w2T']);   b2.append(blk['b2'])
        ln2w.append(blk['ln2w']); ln2b.append(blk['ln2b'])

    stack = lambda xs: jnp.stack(xs, axis=0)
    stack16 = lambda xs: jnp.stack(xs, axis=0).astype(bf16)   # MXU weight stacks

    # embedding table padded to 128 rows (lane-dense one-hot contraction), bf16
    emb = jnp.zeros((V_PAD, E), jnp.float32).at[:vocab_size].set(params['tok_emb'])
    emb = emb.astype(bf16)

    # positional encoding tiled over batch -> (B*S, E), f32
    pe = jnp.tile(positional_encoding(S, E), (B, 1))

    # block-diagonal (per-batch) causal additive mask on (B*S, B*S) scores,
    # tiled once per head along sublanes -> (H*B*S, B*S)
    BS = B * S
    r = jnp.arange(BS)
    same_batch = (r[:, None] // S) == (r[None, :] // S)
    causal = (r[None, :] % S) <= (r[:, None] % S)
    mask = jnp.where(same_batch & causal, 0.0, -1e9).astype(jnp.float32)
    mask = jnp.tile(mask, (H, 1))

    # 0/1 head-lane mask: row block h keeps only lanes [h*hd, (h+1)*hd)
    hmask = jnp.zeros((H * BS, E), jnp.float32)
    for h in range(H):
        hmask = hmask.at[h * BS:(h + 1) * BS, h * hd:(h + 1) * hd].set(1.0)

    # lm_head padded to a 128-lane output slab, bf16 weights / f32 bias
    lm_wT = jnp.zeros((E, V_PAD), jnp.float32).at[:, :vocab_size].set(params['lm_wT'])
    lm_b = jnp.zeros((1, V_PAD), jnp.float32).at[:, :vocab_size].set(params['lm_b'])

    return dict(
        emb=emb, pe=pe, mask=mask, hmask=hmask,
        wqkvT=stack16(wqkvT), bqkv=stack(bqkv),
        woT=stack16(woT), bo=stack(bo),
        ln1w=stack(ln1w), ln1b=stack(ln1b),
        w1T=stack16(w1T), b1=stack(b1), w2T=stack16(w2T), b2=stack(b2),
        ln2w=stack(ln2w), ln2b=stack(ln2b),
        lm_wT=lm_wT.astype(bf16), lm_b=lm_b,
    )


# --------------------------------------------------------------------------
# Forward: single fused, ungridded, fully VMEM-resident pallas_call
# --------------------------------------------------------------------------
@jax.jit
def minigpt_forward(tokens, kp):
    B, S = tokens.shape
    BS = B * S
    tok = tokens.reshape(BS, 1).astype(jnp.int32)
    args = (tok, kp['emb'], kp['pe'], kp['mask'], kp['hmask'],
            kp['wqkvT'], kp['bqkv'], kp['woT'], kp['bo'],
            kp['ln1w'], kp['ln1b'], kp['w1T'], kp['b1'], kp['w2T'], kp['b2'],
            kp['ln2w'], kp['ln2b'], kp['lm_wT'], kp['lm_b'])
    logits_padded = pl.pallas_call(
        minigpt_fused_kernel,
        out_shape=jax.ShapeDtypeStruct((BS, V_PAD), jnp.float32),
        in_specs=[pl.BlockSpec(memory_space=pltpu.MemorySpace.VMEM)] * len(args),
        out_specs=pl.BlockSpec(memory_space=pltpu.MemorySpace.VMEM),
    )(*args)
    return logits_padded[:, :vocab_size].reshape(B, S, vocab_size)


# --------------------------------------------------------------------------
# Deterministic synthetic parameter init (original per-head layout)
# --------------------------------------------------------------------------
def init_params(key):
    hd = n_embed // n_head
    keys = jax.random.split(key, 2 + n_layer)
    params = {
        'tok_emb': jax.random.normal(keys[0], (vocab_size, n_embed), jnp.float32) * 0.02,
    }
    blocks = []
    for l in range(n_layer):
        k = jax.random.split(keys[2 + l], 12)
        blk = dict(
            wqT=jax.random.normal(k[0], (n_head, n_embed, hd), jnp.float32) * 0.02,
            wkT=jax.random.normal(k[1], (n_head, n_embed, hd), jnp.float32) * 0.02,
            wvT=jax.random.normal(k[2], (n_head, n_embed, hd), jnp.float32) * 0.02,
            bq=jax.random.normal(k[3], (n_head, 1, hd), jnp.float32) * 0.02,
            bk=jax.random.normal(k[4], (n_head, 1, hd), jnp.float32) * 0.02,
            bv=jax.random.normal(k[5], (n_head, 1, hd), jnp.float32) * 0.02,
            woT=jax.random.normal(k[6], (n_head, hd, n_embed), jnp.float32) * 0.02,
            bo=jax.random.normal(k[7], (1, n_embed), jnp.float32) * 0.02,
            ln1w=jnp.ones((1, n_embed), jnp.float32),
            ln1b=jnp.zeros((1, n_embed), jnp.float32),
            w1T=jax.random.normal(k[8], (n_embed, 4 * n_embed), jnp.float32) * 0.02,
            b1=jax.random.normal(k[9], (1, 4 * n_embed), jnp.float32) * 0.02,
            w2T=jax.random.normal(k[10], (4 * n_embed, n_embed), jnp.float32) * 0.02,
            b2=jax.random.normal(k[11], (1, n_embed), jnp.float32) * 0.02,
            ln2w=jnp.ones((1, n_embed), jnp.float32),
            ln2b=jnp.zeros((1, n_embed), jnp.float32),
        )
        blocks.append(blk)
    params['blocks'] = blocks
    params['lm_wT'] = jax.random.normal(keys[1], (n_embed, vocab_size), jnp.float32) * 0.02
    params['lm_b'] = jnp.zeros((1, vocab_size), jnp.float32)
    return params


# --------------------------------------------------------------------------
# Pure-JAX reference (same math, f32, no Pallas) for a correctness check
# --------------------------------------------------------------------------
def _block_ref(x, mask, p):
    B, S, E = x.shape
    H, _, hd = p['wqT'].shape
    scale = 1.0 / math.sqrt(hd)
    outs = []
    for b in range(B):
        xb = x[b]
        attn = jnp.zeros((S, E), jnp.float32)
        for h in range(H):
            q = xb @ p['wqT'][h] + p['bq'][h]
            k = xb @ p['wkT'][h] + p['bk'][h]
            v = xb @ p['wvT'][h] + p['bv'][h]
            s = q @ k.T * scale + mask
            pr = jax.nn.softmax(s, axis=-1)
            attn = attn + (pr @ v) @ p['woT'][h]
        attn = attn + p['bo']
        y = _layer_norm(xb + attn, p['ln1w'], p['ln1b'])
        ff = jnp.maximum(y @ p['w1T'] + p['b1'], 0.0) @ p['w2T'] + p['b2']
        outs.append(_layer_norm(y + ff, p['ln2w'], p['ln2b']))
    return jnp.stack(outs)


def minigpt_forward_ref(tokens, params):
    B, S = tokens.shape
    x = jnp.take(params['tok_emb'], tokens, axis=0)
    x = x + positional_encoding(S, n_embed)[None, :, :]
    mask = jnp.triu(jnp.full((S, S), -1e9, jnp.float32), k=1)
    for blk in params['blocks']:
        x = _block_ref(x, mask, blk)
    return jnp.einsum('bse,ev->bsv', x, params['lm_wT']) + params['lm_b']


# --------------------------------------------------------------------------
if __name__ == "__main__":
    key = jax.random.PRNGKey(0)
    pkey, tkey = jax.random.split(key)
    params = init_params(pkey)

    B, S = 2, 8
    tokens = jax.random.randint(tkey, (B, S), 0, vocab_size, dtype=jnp.int32)

    packed = pack_params(params, B, S)
    logits = minigpt_forward(tokens, packed)
    logits = jax.block_until_ready(logits)
    assert logits.shape == (B, S, vocab_size), logits.shape

    ref = minigpt_forward_ref(tokens, params)
    if not bool(jnp.allclose(logits, ref, rtol=1e-2, atol=1e-2)):
        raise SystemExit("mismatch vs pure-JAX reference")

    print("KERNEL_OK")
</pallas_src>

<mosaic_0001>
module attributes {stable_mosaic.version = 11 : i64} {
  func.func @minigpt_fused_kernel(%arg0: memref<16x1xi32, #tpu.memory_space<vmem>>, %arg1: memref<128x64xbf16, #tpu.memory_space<vmem>>, %arg2: memref<16x64xf32, #tpu.memory_space<vmem>>, %arg3: memref<64x16xf32, #tpu.memory_space<vmem>>, %arg4: memref<64x64xf32, #tpu.memory_space<vmem>>, %arg5: memref<2x64x192xbf16, #tpu.memory_space<vmem>>, %arg6: memref<2x1x192xf32, #tpu.memory_space<vmem>>, %arg7: memref<2x64x64xbf16, #tpu.memory_space<vmem>>, %arg8: memref<2x1x64xf32, #tpu.memory_space<vmem>>, %arg9: memref<2x1x64xf32, #tpu.memory_space<vmem>>, %arg10: memref<2x1x64xf32, #tpu.memory_space<vmem>>, %arg11: memref<2x64x256xbf16, #tpu.memory_space<vmem>>, %arg12: memref<2x1x256xf32, #tpu.memory_space<vmem>>, %arg13: memref<2x256x64xbf16, #tpu.memory_space<vmem>>, %arg14: memref<2x1x64xf32, #tpu.memory_space<vmem>>, %arg15: memref<2x1x64xf32, #tpu.memory_space<vmem>>, %arg16: memref<2x1x64xf32, #tpu.memory_space<vmem>>, %arg17: memref<64x128xbf16, #tpu.memory_space<vmem>>, %arg18: memref<1x128xf32, #tpu.memory_space<vmem>>, %arg19: memref<16x128xf32, #tpu.memory_space<vmem>>) attributes {dimension_semantics = [], scalar_prefetch = 0 : i64, scratch_operands = 0 : i64, tpu.core_type = #tpu.core_type<tc>} {
    %0 = tpu.iota {dimensions = array<i32: 1>} : vector<16x128xi32>
    %c0 = arith.constant 0 : index
    %c0_0 = arith.constant 0 : index
    %1 = vector.load %arg0[%c0, %c0_0] : memref<16x1xi32, #tpu.memory_space<vmem>>, vector<16x1xi32>
    %2 = vector.broadcast %1 : vector<16x1xi32> to vector<16x128xi32>
    %3 = arith.cmpi eq, %2, %0 : vector<16x128xi32>
    %cst = arith.constant 1.000000e+00 : f32
    %cst_1 = arith.constant 0.000000e+00 : f32
    %4 = vector.broadcast %cst : f32 to vector<16x128xf32>
    %5 = vector.broadcast %cst_1 : f32 to vector<16x128xf32>
    %6 = arith.select %3, %4, %5 : vector<16x128xi1>, vector<16x128xf32>
    %7 = arith.truncf %6 : vector<16x128xf32> to vector<16x128xbf16>
    %c0_2 = arith.constant 0 : index
    %c0_3 = arith.constant 0 : index
    %8 = vector.load %arg1[%c0_2, %c0_3] : memref<128x64xbf16, #tpu.memory_space<vmem>>, vector<128x64xbf16>
    %cst_4 = arith.constant dense<0.000000e+00> : vector<16x64xf32>
    %9 = tpu.matmul %7, %8, %cst_4 {dimension_numbers = #tpu.dot_dimension_numbers<[1], [0], [0], [1], [0, 0, 1, 1], [], []>} : vector<16x128xbf16>, vector<128x64xbf16>, vector<16x64xf32> -> vector<16x64xf32>
    %c0_5 = arith.constant 0 : index
    %c0_6 = arith.constant 0 : index
    %10 = vector.load %arg2[%c0_5, %c0_6] : memref<16x64xf32, #tpu.memory_space<vmem>>, vector<16x64xf32>
    %11 = arith.addf %9, %10 : vector<16x64xf32>
    %c0_7 = arith.constant 0 : index
    %c0_8 = arith.constant 0 : index
    %12 = vector.load %arg3[%c0_7, %c0_8] : memref<64x16xf32, #tpu.memory_space<vmem>>, vector<64x16xf32>
    %c0_9 = arith.constant 0 : index
    %c0_10 = arith.constant 0 : index
    %13 = vector.load %arg4[%c0_9, %c0_10] : memref<64x64xf32, #tpu.memory_space<vmem>>, vector<64x64xf32>
    %14 = arith.truncf %11 : vector<16x64xf32> to vector<16x64xbf16>
    %c0_11 = arith.constant 0 : index
    %c0_12 = arith.constant 0 : index
    %c0_13 = arith.constant 0 : index
    %15 = vector.load %arg5[%c0_11, %c0_12, %c0_13] : memref<2x64x192xbf16, #tpu.memory_space<vmem>>, vector<1x64x192xbf16>
    %16 = vector.shape_cast %15 : vector<1x64x192xbf16> to vector<64x192xbf16>
    %cst_14 = arith.constant dense<0.000000e+00> : vector<16x192xf32>
    %17 = tpu.matmul %14, %16, %cst_14 {dimension_numbers = #tpu.dot_dimension_numbers<[1], [0], [0], [1], [0, 0, 1, 1], [], []>} : vector<16x64xbf16>, vector<64x192xbf16>, vector<16x192xf32> -> vector<16x192xf32>
    %c0_15 = arith.constant 0 : index
    %c0_16 = arith.constant 0 : index
    %c0_17 = arith.constant 0 : index
    %18 = vector.load %arg6[%c0_15, %c0_16, %c0_17] : memref<2x1x192xf32, #tpu.memory_space<vmem>>, vector<1x1x192xf32>
    %19 = vector.shape_cast %18 : vector<1x1x192xf32> to vector<1x192xf32>
    %20 = vector.broadcast %19 : vector<1x192xf32> to vector<16x192xf32>
    %21 = arith.addf %17, %20 : vector<16x192xf32>
    %22 = vector.extract_strided_slice %21 {offsets = [0, 0], sizes = [16, 64], strides = [1, 1]} : vector<16x192xf32> to vector<16x64xf32>
    %23 = vector.extract_strided_slice %21 {offsets = [0, 64], sizes = [16, 64], strides = [1, 1]} : vector<16x192xf32> to vector<16x64xf32>
    %24 = vector.extract_strided_slice %21 {offsets = [0, 128], sizes = [16, 64], strides = [1, 1]} : vector<16x192xf32> to vector<16x64xf32>
    %25 = tpu.concatenate %22, %22, %22, %22 in 0 : vector<16x64xf32>, vector<16x64xf32>, vector<16x64xf32>, vector<16x64xf32> -> vector<64x64xf32>
    %26 = arith.mulf %25, %13 : vector<64x64xf32>
    %27 = arith.truncf %26 : vector<64x64xf32> to vector<64x64xbf16>
    %28 = arith.truncf %23 : vector<16x64xf32> to vector<16x64xbf16>
    %cst_18 = arith.constant dense<0.000000e+00> : vector<64x16xf32>
    %29 = tpu.matmul %27, %28, %cst_18 {dimension_numbers = #tpu.dot_dimension_numbers<[1], [1], [0], [0], [0, 0, 1, 0], [], []>} : vector<64x64xbf16>, vector<16x64xbf16>, vector<64x16xf32> -> vector<64x16xf32>
    %30 = arith.addf %29, %12 : vector<64x16xf32>
    %cst_19 = arith.constant dense<0xFF800000> : vector<64xf32>
    %31 = vector.multi_reduction <maximumf>, %30, %cst_19 [1] : vector<64x16xf32> to vector<64xf32>
    %32 = vector.shape_cast %31 : vector<64xf32> to vector<64x1xf32>
    %33 = vector.broadcast %32 : vector<64x1xf32> to vector<64x16xf32>
    %34 = arith.subf %30, %33 : vector<64x16xf32>
    %35 = math.exp %34 : vector<64x16xf32>
    %cst_20 = arith.constant dense<0.000000e+00> : vector<64xf32>
    %36 = vector.multi_reduction <add>, %35, %cst_20 [1] : vector<64x16xf32> to vector<64xf32>
    %37 = vector.shape_cast %36 : vector<64xf32> to vector<64x1xf32>
    %38 = tpu.reciprocal %37 {approx = true} : vector<64x1xf32> -> vector<64x1xf32>
    %39 = vector.broadcast %38 : vector<64x1xf32> to vector<64x16xf32>
    %40 = arith.mulf %35, %39 : vector<64x16xf32>
    %41 = arith.truncf %40 : vector<64x16xf32> to vector<64x16xbf16>
    %42 = arith.truncf %24 : vector<16x64xf32> to vector<16x64xbf16>
    %cst_21 = arith.constant dense<0.000000e+00> : vector<64x64xf32>
    %43 = tpu.matmul %41, %42, %cst_21 {dimension_numbers = #tpu.dot_dimension_numbers<[1], [0], [0], [1], [0, 0, 1, 1], [], []>} : vector<64x16xbf16>, vector<16x64xbf16>, vector<64x64xf32> -> vector<64x64xf32>
    %44 = arith.mulf %43, %13 : vector<64x64xf32>
    %45 = vector.extract_strided_slice %44 {offsets = [0, 0], sizes = [16, 64], strides = [1, 1]} : vector<64x64xf32> to vector<16x64xf32>
    %46 = vector.extract_strided_slice %44 {offsets = [16, 0], sizes = [16, 64], strides = [1, 1]} : vector<64x64xf32> to vector<16x64xf32>
    %47 = arith.addf %45, %46 : vector<16x64xf32>
    %48 = vector.extract_strided_slice %44 {offsets = [32, 0], sizes = [16, 64], strides = [1, 1]} : vector<64x64xf32> to vector<16x64xf32>
    %49 = arith.addf %47, %48 : vector<16x64xf32>
    %50 = vector.extract_strided_slice %44 {offsets = [48, 0], sizes = [16, 64], strides = [1, 1]} : vector<64x64xf32> to vector<16x64xf32>
    %51 = arith.addf %49, %50 : vector<16x64xf32>
    %52 = arith.truncf %51 : vector<16x64xf32> to vector<16x64xbf16>
    %c0_22 = arith.constant 0 : index
    %c0_23 = arith.constant 0 : index
    %c0_24 = arith.constant 0 : index
    %53 = vector.load %arg7[%c0_22, %c0_23, %c0_24] : memref<2x64x64xbf16, #tpu.memory_space<vmem>>, vector<1x64x64xbf16>
    %54 = vector.shape_cast %53 : vector<1x64x64xbf16> to vector<64x64xbf16>
    %cst_25 = arith.constant dense<0.000000e+00> : vector<16x64xf32>
    %55 = tpu.matmul %52, %54, %cst_25 {dimension_numbers = #tpu.dot_dimension_numbers<[1], [0], [0], [1], [0, 0, 1, 1], [], []>} : vector<16x64xbf16>, vector<64x64xbf16>, vector<16x64xf32> -> vector<16x64xf32>
    %c0_26 = arith.constant 0 : index
    %c0_27 = arith.constant 0 : index
    %c0_28 = arith.constant 0 : index
    %56 = vector.load %arg8[%c0_26, %c0_27, %c0_28] : memref<2x1x64xf32, #tpu.memory_space<vmem>>, vector<1x1x64xf32>
    %57 = vector.shape_cast %56 : vector<1x1x64xf32> to vector<1x64xf32>
    %58 = vector.broadcast %57 : vector<1x64xf32> to vector<16x64xf32>
    %59 = arith.addf %55, %58 : vector<16x64xf32>
    %60 = arith.addf %11, %59 : vector<16x64xf32>
    %c0_29 = arith.constant 0 : index
    %c0_30 = arith.constant 0 : index
    %c0_31 = arith.constant 0 : index
    %61 = vector.load %arg9[%c0_29, %c0_30, %c0_31] : memref<2x1x64xf32, #tpu.memory_space<vmem>>, vector<1x1x64xf32>
    %62 = vector.shape_cast %61 : vector<1x1x64xf32> to vector<1x64xf32>
    %c0_32 = arith.constant 0 : index
    %c0_33 = arith.constant 0 : index
    %c0_34 = arith.constant 0 : index
    %63 = vector.load %arg10[%c0_32, %c0_33, %c0_34] : memref<2x1x64xf32, #tpu.memory_space<vmem>>, vector<1x1x64xf32>
    %64 = vector.shape_cast %63 : vector<1x1x64xf32> to vector<1x64xf32>
    %cst_35 = arith.constant dense<0.000000e+00> : vector<16xf32>
    %65 = vector.multi_reduction <add>, %60, %cst_35 [1] : vector<16x64xf32> to vector<16xf32>
    %66 = vector.shape_cast %65 : vector<16xf32> to vector<16x1xf32>
    %cst_36 = arith.constant 6.400000e+01 : f32
    %67 = vector.broadcast %cst_36 : f32 to vector<16x1xf32>
    %68 = arith.divf %66, %67 : vector<16x1xf32>
    %69 = arith.mulf %60, %60 : vector<16x64xf32>
    %cst_37 = arith.constant dense<0.000000e+00> : vector<16xf32>
    %70 = vector.multi_reduction <add>, %69, %cst_37 [1] : vector<16x64xf32> to vector<16xf32>
    %71 = vector.shape_cast %70 : vector<16xf32> to vector<16x1xf32>
    %cst_38 = arith.constant 6.400000e+01 : f32
    %72 = vector.broadcast %cst_38 : f32 to vector<16x1xf32>
    %73 = arith.divf %71, %72 : vector<16x1xf32>
    %74 = arith.mulf %68, %68 : vector<16x1xf32>
    %75 = arith.subf %73, %74 : vector<16x1xf32>
    %76 = vector.broadcast %68 : vector<16x1xf32> to vector<16x64xf32>
    %77 = arith.subf %60, %76 : vector<16x64xf32>
    %cst_39 = arith.constant 9.99999974E-6 : f32
    %78 = vector.broadcast %cst_39 : f32 to vector<16x1xf32>
    %79 = arith.addf %75, %78 : vector<16x1xf32>
    %80 = math.rsqrt %79 : vector<16x1xf32>
    %81 = vector.broadcast %80 : vector<16x1xf32> to vector<16x64xf32>
    %82 = arith.mulf %77, %81 : vector<16x64xf32>
    %83 = vector.broadcast %62 : vector<1x64xf32> to vector<16x64xf32>
    %84 = arith.mulf %82, %83 : vector<16x64xf32>
    %85 = vector.broadcast %64 : vector<1x64xf32> to vector<16x64xf32>
    %86 = arith.addf %84, %85 : vector<16x64xf32>
    %87 = arith.truncf %86 : vector<16x64xf32> to vector<16x64xbf16>
    %c0_40 = arith.constant 0 : index
    %c0_41 = arith.constant 0 : index
    %c0_42 = arith.constant 0 : index
    %88 = vector.load %arg11[%c0_40, %c0_41, %c0_42] : memref<2x64x256xbf16, #tpu.memory_space<vmem>>, vector<1x64x256xbf16>
    %89 = vector.shape_cast %88 : vector<1x64x256xbf16> to vector<64x256xbf16>
    %cst_43 = arith.constant dense<0.000000e+00> : vector<16x256xf32>
    %90 = tpu.matmul %87, %89, %cst_43 {dimension_numbers = #tpu.dot_dimension_numbers<[1], [0], [0], [1], [0, 0, 1, 1], [], []>} : vector<16x64xbf16>, vector<64x256xbf16>, vector<16x256xf32> -> vector<16x256xf32>
    %c0_44 = arith.constant 0 : index
    %c0_45 = arith.constant 0 : index
    %c0_46 = arith.constant 0 : index
    %91 = vector.load %arg12[%c0_44, %c0_45, %c0_46] : memref<2x1x256xf32, #tpu.memory_space<vmem>>, vector<1x1x256xf32>
    %92 = vector.shape_cast %91 : vector<1x1x256xf32> to vector<1x256xf32>
    %93 = vector.broadcast %92 : vector<1x256xf32> to vector<16x256xf32>
    %94 = arith.addf %90, %93 : vector<16x256xf32>
    %cst_47 = arith.constant 0.000000e+00 : f32
    %95 = vector.broadcast %cst_47 : f32 to vector<16x256xf32>
    %96 = arith.maximumf %94, %95 : vector<16x256xf32>
    %97 = arith.truncf %96 : vector<16x256xf32> to vector<16x256xbf16>
    %c0_48 = arith.constant 0 : index
    %c0_49 = arith.constant 0 : index
    %c0_50 = arith.constant 0 : index
    %98 = vector.load %arg13[%c0_48, %c0_49, %c0_50] : memref<2x256x64xbf16, #tpu.memory_space<vmem>>, vector<1x256x64xbf16>
    %99 = vector.shape_cast %98 : vector<1x256x64xbf16> to vector<256x64xbf16>
    %cst_51 = arith.constant dense<0.000000e+00> : vector<16x64xf32>
    %100 = tpu.matmul %97, %99, %cst_51 {dimension_numbers = #tpu.dot_dimension_numbers<[1], [0], [0], [1], [0, 0, 1, 1], [], []>} : vector<16x256xbf16>, vector<256x64xbf16>, vector<16x64xf32> -> vector<16x64xf32>
    %c0_52 = arith.constant 0 : index
    %c0_53 = arith.constant 0 : index
    %c0_54 = arith.constant 0 : index
    %101 = vector.load %arg14[%c0_52, %c0_53, %c0_54] : memref<2x1x64xf32, #tpu.memory_space<vmem>>, vector<1x1x64xf32>
    %102 = vector.shape_cast %101 : vector<1x1x64xf32> to vector<1x64xf32>
    %103 = vector.broadcast %102 : vector<1x64xf32> to vector<16x64xf32>
    %104 = arith.addf %100, %103 : vector<16x64xf32>
    %105 = arith.addf %86, %104 : vector<16x64xf32>
    %c0_55 = arith.constant 0 : index
    %c0_56 = arith.constant 0 : index
    %c0_57 = arith.constant 0 : index
    %106 = vector.load %arg15[%c0_55, %c0_56, %c0_57] : memref<2x1x64xf32, #tpu.memory_space<vmem>>, vector<1x1x64xf32>
    %107 = vector.shape_cast %106 : vector<1x1x64xf32> to vector<1x64xf32>
    %c0_58 = arith.constant 0 : index
    %c0_59 = arith.constant 0 : index
    %c0_60 = arith.constant 0 : index
    %108 = vector.load %arg16[%c0_58, %c0_59, %c0_60] : memref<2x1x64xf32, #tpu.memory_space<vmem>>, vector<1x1x64xf32>
    %109 = vector.shape_cast %108 : vector<1x1x64xf32> to vector<1x64xf32>
    %cst_61 = arith.constant dense<0.000000e+00> : vector<16xf32>
    %110 = vector.multi_reduction <add>, %105, %cst_61 [1] : vector<16x64xf32> to vector<16xf32>
    %111 = vector.shape_cast %110 : vector<16xf32> to vector<16x1xf32>
    %cst_62 = arith.constant 6.400000e+01 : f32
    %112 = vector.broadcast %cst_62 : f32 to vector<16x1xf32>
    %113 = arith.divf %111, %112 : vector<16x1xf32>
    %114 = arith.mulf %105, %105 : vector<16x64xf32>
    %cst_63 = arith.constant dense<0.000000e+00> : vector<16xf32>
    %115 = vector.multi_reduction <add>, %114, %cst_63 [1] : vector<16x64xf32> to vector<16xf32>
    %116 = vector.shape_cast %115 : vector<16xf32> to vector<16x1xf32>
    %cst_64 = arith.constant 6.400000e+01 : f32
    %117 = vector.broadcast %cst_64 : f32 to vector<16x1xf32>
    %118 = arith.divf %116, %117 : vector<16x1xf32>
    %119 = arith.mulf %113, %113 : vector<16x1xf32>
    %120 = arith.subf %118, %119 : vector<16x1xf32>
    %121 = vector.broadcast %113 : vector<16x1xf32> to vector<16x64xf32>
    %122 = arith.subf %105, %121 : vector<16x64xf32>
    %cst_65 = arith.constant 9.99999974E-6 : f32
    %123 = vector.broadcast %cst_65 : f32 to vector<16x1xf32>
    %124 = arith.addf %120, %123 : vector<16x1xf32>
    %125 = math.rsqrt %124 : vector<16x1xf32>
    %126 = vector.broadcast %125 : vector<16x1xf32> to vector<16x64xf32>
    %127 = arith.mulf %122, %126 : vector<16x64xf32>
    %128 = vector.broadcast %107 : vector<1x64xf32> to vector<16x64xf32>
    %129 = arith.mulf %127, %128 : vector<16x64xf32>
    %130 = vector.broadcast %109 : vector<1x64xf32> to vector<16x64xf32>
    %131 = arith.addf %129, %130 : vector<16x64xf32>
    %132 = arith.truncf %131 : vector<16x64xf32> to vector<16x64xbf16>
    %c1 = arith.constant 1 : index
    %c0_66 = arith.constant 0 : index
    %c0_67 = arith.constant 0 : index
    %133 = vector.load %arg5[%c1, %c0_66, %c0_67] : memref<2x64x192xbf16, #tpu.memory_space<vmem>>, vector<1x64x192xbf16>
    %134 = vector.shape_cast %133 : vector<1x64x192xbf16> to vector<64x192xbf16>
    %cst_68 = arith.constant dense<0.000000e+00> : vector<16x192xf32>
    %135 = tpu.matmul %132, %134, %cst_68 {dimension_numbers = #tpu.dot_dimension_numbers<[1], [0], [0], [1], [0, 0, 1, 1], [], []>} : vector<16x64xbf16>, vector<64x192xbf16>, vector<16x192xf32> -> vector<16x192xf32>
    %c1_69 = arith.constant 1 : index
    %c0_70 = arith.constant 0 : index
    %c0_71 = arith.constant 0 : index
    %136 = vector.load %arg6[%c1_69, %c0_70, %c0_71] : memref<2x1x192xf32, #tpu.memory_space<vmem>>, vector<1x1x192xf32>
    %137 = vector.shape_cast %136 : vector<1x1x192xf32> to vector<1x192xf32>
    %138 = vector.broadcast %137 : vector<1x192xf32> to vector<16x192xf32>
    %139 = arith.addf %135, %138 : vector<16x192xf32>
    %140 = vector.extract_strided_slice %139 {offsets = [0, 0], sizes = [16, 64], strides = [1, 1]} : vector<16x192xf32> to vector<16x64xf32>
    %141 = vector.extract_strided_slice %139 {offsets = [0, 64], sizes = [16, 64], strides = [1, 1]} : vector<16x192xf32> to vector<16x64xf32>
    %142 = vector.extract_strided_slice %139 {offsets = [0, 128], sizes = [16, 64], strides = [1, 1]} : vector<16x192xf32> to vector<16x64xf32>
    %143 = tpu.concatenate %140, %140, %140, %140 in 0 : vector<16x64xf32>, vector<16x64xf32>, vector<16x64xf32>, vector<16x64xf32> -> vector<64x64xf32>
    %144 = arith.mulf %143, %13 : vector<64x64xf32>
    %145 = arith.truncf %144 : vector<64x64xf32> to vector<64x64xbf16>
    %146 = arith.truncf %141 : vector<16x64xf32> to vector<16x64xbf16>
    %cst_72 = arith.constant dense<0.000000e+00> : vector<64x16xf32>
    %147 = tpu.matmul %145, %146, %cst_72 {dimension_numbers = #tpu.dot_dimension_numbers<[1], [1], [0], [0], [0, 0, 1, 0], [], []>} : vector<64x64xbf16>, vector<16x64xbf16>, vector<64x16xf32> -> vector<64x16xf32>
    %148 = arith.addf %147, %12 : vector<64x16xf32>
    %cst_73 = arith.constant dense<0xFF800000> : vector<64xf32>
    %149 = vector.multi_reduction <maximumf>, %148, %cst_73 [1] : vector<64x16xf32> to vector<64xf32>
    %150 = vector.shape_cast %149 : vector<64xf32> to vector<64x1xf32>
    %151 = vector.broadcast %150 : vector<64x1xf32> to vector<64x16xf32>
    %152 = arith.subf %148, %151 : vector<64x16xf32>
    %153 = math.exp %152 : vector<64x16xf32>
    %cst_74 = arith.constant dense<0.000000e+00> : vector<64xf32>
    %154 = vector.multi_reduction <add>, %153, %cst_74 [1] : vector<64x16xf32> to vector<64xf32>
    %155 = vector.shape_cast %154 : vector<64xf32> to vector<64x1xf32>
    %156 = tpu.reciprocal %155 {approx = true} : vector<64x1xf32> -> vector<64x1xf32>
    %157 = vector.broadcast %156 : vector<64x1xf32> to vector<64x16xf32>
    %158 = arith.mulf %153, %157 : vector<64x16xf32>
    %159 = arith.truncf %158 : vector<64x16xf32> to vector<64x16xbf16>
    %160 = arith.truncf %142 : vector<16x64xf32> to vector<16x64xbf16>
    %cst_75 = arith.constant dense<0.000000e+00> : vector<64x64xf32>
    %161 = tpu.matmul %159, %160, %cst_75 {dimension_numbers = #tpu.dot_dimension_numbers<[1], [0], [0], [1], [0, 0, 1, 1], [], []>} : vector<64x16xbf16>, vector<16x64xbf16>, vector<64x64xf32> -> vector<64x64xf32>
    %162 = arith.mulf %161, %13 : vector<64x64xf32>
    %163 = vector.extract_strided_slice %162 {offsets = [0, 0], sizes = [16, 64], strides = [1, 1]} : vector<64x64xf32> to vector<16x64xf32>
    %164 = vector.extract_strided_slice %162 {offsets = [16, 0], sizes = [16, 64], strides = [1, 1]} : vector<64x64xf32> to vector<16x64xf32>
    %165 = arith.addf %163, %164 : vector<16x64xf32>
    %166 = vector.extract_strided_slice %162 {offsets = [32, 0], sizes = [16, 64], strides = [1, 1]} : vector<64x64xf32> to vector<16x64xf32>
    %167 = arith.addf %165, %166 : vector<16x64xf32>
    %168 = vector.extract_strided_slice %162 {offsets = [48, 0], sizes = [16, 64], strides = [1, 1]} : vector<64x64xf32> to vector<16x64xf32>
    %169 = arith.addf %167, %168 : vector<16x64xf32>
    %170 = arith.truncf %169 : vector<16x64xf32> to vector<16x64xbf16>
    %c1_76 = arith.constant 1 : index
    %c0_77 = arith.constant 0 : index
    %c0_78 = arith.constant 0 : index
    %171 = vector.load %arg7[%c1_76, %c0_77, %c0_78] : memref<2x64x64xbf16, #tpu.memory_space<vmem>>, vector<1x64x64xbf16>
    %172 = vector.shape_cast %171 : vector<1x64x64xbf16> to vector<64x64xbf16>
    %cst_79 = arith.constant dense<0.000000e+00> : vector<16x64xf32>
    %173 = tpu.matmul %170, %172, %cst_79 {dimension_numbers = #tpu.dot_dimension_numbers<[1], [0], [0], [1], [0, 0, 1, 1], [], []>} : vector<16x64xbf16>, vector<64x64xbf16>, vector<16x64xf32> -> vector<16x64xf32>
    %c1_80 = arith.constant 1 : index
    %c0_81 = arith.constant 0 : index
    %c0_82 = arith.constant 0 : index
    %174 = vector.load %arg8[%c1_80, %c0_81, %c0_82] : memref<2x1x64xf32, #tpu.memory_space<vmem>>, vector<1x1x64xf32>
    %175 = vector.shape_cast %174 : vector<1x1x64xf32> to vector<1x64xf32>
    %176 = vector.broadcast %175 : vector<1x64xf32> to vector<16x64xf32>
    %177 = arith.addf %173, %176 : vector<16x64xf32>
    %178 = arith.addf %131, %177 : vector<16x64xf32>
    %c1_83 = arith.constant 1 : index
    %c0_84 = arith.constant 0 : index
    %c0_85 = arith.constant 0 : index
    %179 = vector.load %arg9[%c1_83, %c0_84, %c0_85] : memref<2x1x64xf32, #tpu.memory_space<vmem>>, vector<1x1x64xf32>
    %180 = vector.shape_cast %179 : vector<1x1x64xf32> to vector<1x64xf32>
    %c1_86 = arith.constant 1 : index
    %c0_87 = arith.constant 0 : index
    %c0_88 = arith.constant 0 : index
    %181 = vector.load %arg10[%c1_86, %c0_87, %c0_88] : memref<2x1x64xf32, #tpu.memory_space<vmem>>, vector<1x1x64xf32>
    %182 = vector.shape_cast %181 : vector<1x1x64xf32> to vector<1x64xf32>
    %cst_89 = arith.constant dense<0.000000e+00> : vector<16xf32>
    %183 = vector.multi_reduction <add>, %178, %cst_89 [1] : vector<16x64xf32> to vector<16xf32>
    %184 = vector.shape_cast %183 : vector<16xf32> to vector<16x1xf32>
    %cst_90 = arith.constant 6.400000e+01 : f32
    %185 = vector.broadcast %cst_90 : f32 to vector<16x1xf32>
    %186 = arith.divf %184, %185 : vector<16x1xf32>
    %187 = arith.mulf %178, %178 : vector<16x64xf32>
    %cst_91 = arith.constant dense<0.000000e+00> : vector<16xf32>
    %188 = vector.multi_reduction <add>, %187, %cst_91 [1] : vector<16x64xf32> to vector<16xf32>
    %189 = vector.shape_cast %188 : vector<16xf32> to vector<16x1xf32>
    %cst_92 = arith.constant 6.400000e+01 : f32
    %190 = vector.broadcast %cst_92 : f32 to vector<16x1xf32>
    %191 = arith.divf %189, %190 : vector<16x1xf32>
    %192 = arith.mulf %186, %186 : vector<16x1xf32>
    %193 = arith.subf %191, %192 : vector<16x1xf32>
    %194 = vector.broadcast %186 : vector<16x1xf32> to vector<16x64xf32>
    %195 = arith.subf %178, %194 : vector<16x64xf32>
    %cst_93 = arith.constant 9.99999974E-6 : f32
    %196 = vector.broadcast %cst_93 : f32 to vector<16x1xf32>
    %197 = arith.addf %193, %196 : vector<16x1xf32>
    %198 = math.rsqrt %197 : vector<16x1xf32>
    %199 = vector.broadcast %198 : vector<16x1xf32> to vector<16x64xf32>
    %200 = arith.mulf %195, %199 : vector<16x64xf32>
    %201 = vector.broadcast %180 : vector<1x64xf32> to vector<16x64xf32>
    %202 = arith.mulf %200, %201 : vector<16x64xf32>
    %203 = vector.broadcast %182 : vector<1x64xf32> to vector<16x64xf32>
    %204 = arith.addf %202, %203 : vector<16x64xf32>
    %205 = arith.truncf %204 : vector<16x64xf32> to vector<16x64xbf16>
    %c1_94 = arith.constant 1 : index
    %c0_95 = arith.constant 0 : index
    %c0_96 = arith.constant 0 : index
    %206 = vector.load %arg11[%c1_94, %c0_95, %c0_96] : memref<2x64x256xbf16, #tpu.memory_space<vmem>>, vector<1x64x256xbf16>
    %207 = vector.shape_cast %206 : vector<1x64x256xbf16> to vector<64x256xbf16>
    %cst_97 = arith.constant dense<0.000000e+00> : vector<16x256xf32>
    %208 = tpu.matmul %205, %207, %cst_97 {dimension_numbers = #tpu.dot_dimension_numbers<[1], [0], [0], [1], [0, 0, 1, 1], [], []>} : vector<16x64xbf16>, vector<64x256xbf16>, vector<16x256xf32> -> vector<16x256xf32>
    %c1_98 = arith.constant 1 : index
    %c0_99 = arith.constant 0 : index
    %c0_100 = arith.constant 0 : index
    %209 = vector.load %arg12[%c1_98, %c0_99, %c0_100] : memref<2x1x256xf32, #tpu.memory_space<vmem>>, vector<1x1x256xf32>
    %210 = vector.shape_cast %209 : vector<1x1x256xf32> to vector<1x256xf32>
    %211 = vector.broadcast %210 : vector<1x256xf32> to vector<16x256xf32>
    %212 = arith.addf %208, %211 : vector<16x256xf32>
    %cst_101 = arith.constant 0.000000e+00 : f32
    %213 = vector.broadcast %cst_101 : f32 to vector<16x256xf32>
    %214 = arith.maximumf %212, %213 : vector<16x256xf32>
    %215 = arith.truncf %214 : vector<16x256xf32> to vector<16x256xbf16>
    %c1_102 = arith.constant 1 : index
    %c0_103 = arith.constant 0 : index
    %c0_104 = arith.constant 0 : index
    %216 = vector.load %arg13[%c1_102, %c0_103, %c0_104] : memref<2x256x64xbf16, #tpu.memory_space<vmem>>, vector<1x256x64xbf16>
    %217 = vector.shape_cast %216 : vector<1x256x64xbf16> to vector<256x64xbf16>
    %cst_105 = arith.constant dense<0.000000e+00> : vector<16x64xf32>
    %218 = tpu.matmul %215, %217, %cst_105 {dimension_numbers = #tpu.dot_dimension_numbers<[1], [0], [0], [1], [0, 0, 1, 1], [], []>} : vector<16x256xbf16>, vector<256x64xbf16>, vector<16x64xf32> -> vector<16x64xf32>
    %c1_106 = arith.constant 1 : index
    %c0_107 = arith.constant 0 : index
    %c0_108 = arith.constant 0 : index
    %219 = vector.load %arg14[%c1_106, %c0_107, %c0_108] : memref<2x1x64xf32, #tpu.memory_space<vmem>>, vector<1x1x64xf32>
    %220 = vector.shape_cast %219 : vector<1x1x64xf32> to vector<1x64xf32>
    %221 = vector.broadcast %220 : vector<1x64xf32> to vector<16x64xf32>
    %222 = arith.addf %218, %221 : vector<16x64xf32>
    %223 = arith.addf %204, %222 : vector<16x64xf32>
    %c1_109 = arith.constant 1 : index
    %c0_110 = arith.constant 0 : index
    %c0_111 = arith.constant 0 : index
    %224 = vector.load %arg15[%c1_109, %c0_110, %c0_111] : memref<2x1x64xf32, #tpu.memory_space<vmem>>, vector<1x1x64xf32>
    %225 = vector.shape_cast %224 : vector<1x1x64xf32> to vector<1x64xf32>
    %c1_112 = arith.constant 1 : index
    %c0_113 = arith.constant 0 : index
    %c0_114 = arith.constant 0 : index
    %226 = vector.load %arg16[%c1_112, %c0_113, %c0_114] : memref<2x1x64xf32, #tpu.memory_space<vmem>>, vector<1x1x64xf32>
    %227 = vector.shape_cast %226 : vector<1x1x64xf32> to vector<1x64xf32>
    %cst_115 = arith.constant dense<0.000000e+00> : vector<16xf32>
    %228 = vector.multi_reduction <add>, %223, %cst_115 [1] : vector<16x64xf32> to vector<16xf32>
    %229 = vector.shape_cast %228 : vector<16xf32> to vector<16x1xf32>
    %cst_116 = arith.constant 6.400000e+01 : f32
    %230 = vector.broadcast %cst_116 : f32 to vector<16x1xf32>
    %231 = arith.divf %229, %230 : vector<16x1xf32>
    %232 = arith.mulf %223, %223 : vector<16x64xf32>
    %cst_117 = arith.constant dense<0.000000e+00> : vector<16xf32>
    %233 = vector.multi_reduction <add>, %232, %cst_117 [1] : vector<16x64xf32> to vector<16xf32>
    %234 = vector.shape_cast %233 : vector<16xf32> to vector<16x1xf32>
    %cst_118 = arith.constant 6.400000e+01 : f32
    %235 = vector.broadcast %cst_118 : f32 to vector<16x1xf32>
    %236 = arith.divf %234, %235 : vector<16x1xf32>
    %237 = arith.mulf %231, %231 : vector<16x1xf32>
    %238 = arith.subf %236, %237 : vector<16x1xf32>
    %239 = vector.broadcast %231 : vector<16x1xf32> to vector<16x64xf32>
    %240 = arith.subf %223, %239 : vector<16x64xf32>
    %cst_119 = arith.constant 9.99999974E-6 : f32
    %241 = vector.broadcast %cst_119 : f32 to vector<16x1xf32>
    %242 = arith.addf %238, %241 : vector<16x1xf32>
    %243 = math.rsqrt %242 : vector<16x1xf32>
    %244 = vector.broadcast %243 : vector<16x1xf32> to vector<16x64xf32>
    %245 = arith.mulf %240, %244 : vector<16x64xf32>
    %246 = vector.broadcast %225 : vector<1x64xf32> to vector<16x64xf32>
    %247 = arith.mulf %245, %246 : vector<16x64xf32>
    %248 = vector.broadcast %227 : vector<1x64xf32> to vector<16x64xf32>
    %249 = arith.addf %247, %248 : vector<16x64xf32>
    %250 = arith.truncf %249 : vector<16x64xf32> to vector<16x64xbf16>
    %c0_120 = arith.constant 0 : index
    %c0_121 = arith.constant 0 : index
    %251 = vector.load %arg17[%c0_120, %c0_121] : memref<64x128xbf16, #tpu.memory_space<vmem>>, vector<64x128xbf16>
    %cst_122 = arith.constant dense<0.000000e+00> : vector<16x128xf32>
    %252 = tpu.matmul %250, %251, %cst_122 {dimension_numbers = #tpu.dot_dimension_numbers<[1], [0], [0], [1], [0, 0, 1, 1], [], []>} : vector<16x64xbf16>, vector<64x128xbf16>, vector<16x128xf32> -> vector<16x128xf32>
    %c0_123 = arith.constant 0 : index
    %c0_124 = arith.constant 0 : index
    %253 = vector.load %arg18[%c0_123, %c0_124] : memref<1x128xf32, #tpu.memory_space<vmem>>, vector<1x128xf32>
    %254 = vector.broadcast %253 : vector<1x128xf32> to vector<16x128xf32>
    %255 = arith.addf %252, %254 : vector<16x128xf32>
    %c0_125 = arith.constant 0 : index
    %c0_126 = arith.constant 0 : index
    %256 = vector.load %arg19[%c0_125, %c0_126] : memref<16x128xf32, #tpu.memory_space<vmem>>, vector<16x128xf32>
    tpu.vector_store %arg19[%c0_125, %c0_126], %255 {strides = array<i32>} : memref<16x128xf32, #tpu.memory_space<vmem>>, vector<16x128xf32>,
    return
  }
}

</mosaic_0001>

<llo_original>
// kernel: minigpt_forward.1
$region0: #{minigpt_forward.1}
  #allocation0 [shape = 'u32[]', space=smem, size = 0x4, offset = 0x4, fixed_abs, tag = 'smem constant byte address 0x4 - core index']
  #allocation1 [shape = 'u32[144,128]{1,0:T(1,128)}', space=vmem, size = 0x12000, scoped, tag = 'internal scratch']
  %s0 = inlined_call_operand.vmem [shape: s32[16,1], index: 0, kind: input, shape index: {}]
  %s1 = inlined_call_operand.vmem [shape: bf16[128,64], index: 1, kind: input, shape index: {}]
  %s2 = inlined_call_operand.vmem [shape: f32[16,64], index: 2, kind: input, shape index: {}]
  %s3 = inlined_call_operand.vmem [shape: f32[64,16], index: 3, kind: input, shape index: {}]
  %s4 = inlined_call_operand.vmem [shape: f32[64,64], index: 4, kind: input, shape index: {}]
  %s5 = inlined_call_operand.vmem [shape: bf16[2,64,192], index: 5, kind: input, shape index: {}]
  %s6 = inlined_call_operand.vmem [shape: f32[2,1,192], index: 6, kind: input, shape index: {}]
  %s7 = inlined_call_operand.vmem [shape: bf16[2,64,64], index: 7, kind: input, shape index: {}]
  %s8 = inlined_call_operand.vmem [shape: f32[2,1,64], index: 8, kind: input, shape index: {}]
  %s9 = inlined_call_operand.vmem [shape: f32[2,1,64], index: 9, kind: input, shape index: {}]
  %s10 = inlined_call_operand.vmem [shape: f32[2,1,64], index: 10, kind: input, shape index: {}]
  %s11 = inlined_call_operand.vmem [shape: bf16[2,64,256], index: 11, kind: input, shape index: {}]
  %s12 = inlined_call_operand.vmem [shape: f32[2,1,256], index: 12, kind: input, shape index: {}]
  %s13 = inlined_call_operand.vmem [shape: bf16[2,256,64], index: 13, kind: input, shape index: {}]
  %s14 = inlined_call_operand.vmem [shape: f32[2,1,64], index: 14, kind: input, shape index: {}]
  %s15 = inlined_call_operand.vmem [shape: f32[2,1,64], index: 15, kind: input, shape index: {}]
  %s16 = inlined_call_operand.vmem [shape: f32[2,1,64], index: 16, kind: input, shape index: {}]
  %s17 = inlined_call_operand.vmem [shape: bf16[64,128], index: 17, kind: input, shape index: {}]
  %s18 = inlined_call_operand.vmem [shape: f32[1,128], index: 18, kind: input, shape index: {}]
  %s19 = inlined_call_operand.vmem [shape: f32[16,128], index: 19, kind: output, shape index: {}]
  %s20 = sld [smem:[#allocation0]]
  $region86: #{minigpt_forward.1} parent=0
    _
  %s22 = ssub.s32 1, %s20
  %s23 = scalar_select 0, %s22, %s20
  // Predicated region
  $region2: #{minigpt_forward.1} parent=0 // pred_check
    _
  $region3: #{minigpt_forward.1} parent=0 // pred_check_branch
    %25 = sbr.rel (0) target = $region5
  $region4: #{minigpt_forward.1} parent=0 // pred_region
    _
  $region5: #{minigpt_forward.1} parent=0 // pred_fallthru
    _
  // Predicated region
  $region6: #{minigpt_forward.1} parent=0 // pred_check
    _
  $region7: #{minigpt_forward.1} parent=0 // pred_check_branch
    %27 = sbr.rel (0) target = $region9
  $region8: #{minigpt_forward.1} parent=0 // pred_region
    _
  $region9: #{minigpt_forward.1} parent=0 // pred_fallthru
    _
  // Predicated region
  $region10: #{minigpt_forward.1} parent=0 // pred_check
    _
  $region11: #{minigpt_forward.1} parent=0 // pred_check_branch
    %29 = sbr.rel (0) target = $region13
  $region12: #{minigpt_forward.1} parent=0 // pred_region
    _
  $region13: #{minigpt_forward.1} parent=0 // pred_fallthru
    _
  // Predicated region
  $region14: #{minigpt_forward.1} parent=0 // pred_check
    _
  $region15: #{minigpt_forward.1} parent=0 // pred_check_branch
    %31 = sbr.rel (0) target = $region17
  $region16: #{minigpt_forward.1} parent=0 // pred_region
    _
  $region17: #{minigpt_forward.1} parent=0 // pred_fallthru
    _
  // Predicated region
  $region18: #{minigpt_forward.1} parent=0 // pred_check
    _
  $region19: #{minigpt_forward.1} parent=0 // pred_check_branch
    %33 = sbr.rel (0) target = $region21
  $region20: #{minigpt_forward.1} parent=0 // pred_region
    _
  $region21: #{minigpt_forward.1} parent=0 // pred_fallthru
    _
  // Predicated region
  $region22: #{minigpt_forward.1} parent=0 // pred_check
    _
  $region23: #{minigpt_forward.1} parent=0 // pred_check_branch
    %35 = sbr.rel (0) target = $region25
  $region24: #{minigpt_forward.1} parent=0 // pred_region
    _
  $region25: #{minigpt_forward.1} parent=0 // pred_fallthru
    _
  // Predicated region
  $region26: #{minigpt_forward.1} parent=0 // pred_check
    _
  $region27: #{minigpt_forward.1} parent=0 // pred_check_branch
    %37 = sbr.rel (0) target = $region29
  $region28: #{minigpt_forward.1} parent=0 // pred_region
    _
  $region29: #{minigpt_forward.1} parent=0 // pred_fallthru
    _
  // Predicated region
  $region30: #{minigpt_forward.1} parent=0 // pred_check
    _
  $region31: #{minigpt_forward.1} parent=0 // pred_check_branch
    %39 = sbr.rel (0) target = $region33
  $region32: #{minigpt_forward.1} parent=0 // pred_region
    _
  $region33: #{minigpt_forward.1} parent=0 // pred_fallthru
    _
  // Predicated region
  $region34: #{minigpt_forward.1} parent=0 // pred_check
    _
  $region35: #{minigpt_forward.1} parent=0 // pred_check_branch
    %41 = sbr.rel (0) target = $region37
  $region36: #{minigpt_forward.1} parent=0 // pred_region
    _
  $region37: #{minigpt_forward.1} parent=0 // pred_fallthru
    _
  // Predicated region
  $region38: #{minigpt_forward.1} parent=0 // pred_check
    _
  $region39: #{minigpt_forward.1} parent=0 // pred_check_branch
    %43 = sbr.rel (0) target = $region41
  $region40: #{minigpt_forward.1} parent=0 // pred_region
    _
  $region41: #{minigpt_forward.1} parent=0 // pred_fallthru
    _
  // Predicated region
  $region42: #{minigpt_forward.1} parent=0 // pred_check
    _
  $region43: #{minigpt_forward.1} parent=0 // pred_check_branch
    %45 = sbr.rel (0) target = $region45
  $region44: #{minigpt_forward.1} parent=0 // pred_region
    _
  $region45: #{minigpt_forward.1} parent=0 // pred_fallthru
    _
  // Predicated region
  $region46: #{minigpt_forward.1} parent=0 // pred_check
    _
  $region47: #{minigpt_forward.1} parent=0 // pred_check_branch
    %47 = sbr.rel (0) target = $region49
  $region48: #{minigpt_forward.1} parent=0 // pred_region
    _
  $region49: #{minigpt_forward.1} parent=0 // pred_fallthru
    _
  // Predicated region
  $region50: #{minigpt_forward.1} parent=0 // pred_check
    _
  $region51: #{minigpt_forward.1} parent=0 // pred_check_branch
    %49 = sbr.rel (0) target = $region53
  $region52: #{minigpt_forward.1} parent=0 // pred_region
    _
  $region53: #{minigpt_forward.1} parent=0 // pred_fallthru
    _
  // Predicated region
  $region54: #{minigpt_forward.1} parent=0 // pred_check
    _
  $region55: #{minigpt_forward.1} parent=0 // pred_check_branch
    %51 = sbr.rel (0) target = $region57
  $region56: #{minigpt_forward.1} parent=0 // pred_region
    _
  $region57: #{minigpt_forward.1} parent=0 // pred_fallthru
    _
  // Predicated region
  $region58: #{minigpt_forward.1} parent=0 // pred_check
    _
  $region59: #{minigpt_forward.1} parent=0 // pred_check_branch
    %53 = sbr.rel (0) target = $region61
  $region60: #{minigpt_forward.1} parent=0 // pred_region
    _
  $region61: #{minigpt_forward.1} parent=0 // pred_fallthru
    _
  // Predicated region
  $region62: #{minigpt_forward.1} parent=0 // pred_check
    _
  $region63: #{minigpt_forward.1} parent=0 // pred_check_branch
    %55 = sbr.rel (0) target = $region65
  $region64: #{minigpt_forward.1} parent=0 // pred_region
    _
  $region65: #{minigpt_forward.1} parent=0 // pred_fallthru
    _
  // Predicated region
  $region66: #{minigpt_forward.1} parent=0 // pred_check
    _
  $region67: #{minigpt_forward.1} parent=0 // pred_check_branch
    %57 = sbr.rel (0) target = $region69
  $region68: #{minigpt_forward.1} parent=0 // pred_region
    _
  $region69: #{minigpt_forward.1} parent=0 // pred_fallthru
    _
  // Predicated region
  $region70: #{minigpt_forward.1} parent=0 // pred_check
    _
  $region71: #{minigpt_forward.1} parent=0 // pred_check_branch
    %59 = sbr.rel (0) target = $region73
  $region72: #{minigpt_forward.1} parent=0 // pred_region
    _
  $region73: #{minigpt_forward.1} parent=0 // pred_fallthru
    _
  // Predicated region
  $region74: #{minigpt_forward.1} parent=0 // pred_check
    _
  $region75: #{minigpt_forward.1} parent=0 // pred_check_branch
    %61 = sbr.rel (0) target = $region77
  $region76: #{minigpt_forward.1} parent=0 // pred_region
    _
  $region77: #{minigpt_forward.1} parent=0 // pred_fallthru
    _
  %v63 = vlaneseq
  %v64 = vand.u32 %v63, 127
  %v65 = vld [vmem:[%s0] sm:$0xff]
  %v66 = vld [vmem:[%s0 + $0x8] sm:$0xff]
  %67 = vset.pattern.permute.xlu0 0
  %68 = vperm.xlu0 %67, %v65
  %v69 = vpop.permute.xlu0 %68
  %70 = vset.pattern.permute.xlu0 0
  %71 = vperm.xlu0 %70, %v66
  %v72 = vpop.permute.xlu0 %71
  %vm73 = vcmp.eq.s32.totalorder %v69, %v64
  %vm74 = vcmp.eq.s32.totalorder %v72, %v64
  %v75 = vsel %vm73, 1.0, 0.0
  %v76 = vsel %vm74, 1.0, 0.0
  %v77 = vpack.c.bf16 %v76, %v75
  %v78 = vld [vmem:[%s1] sm:$0xf]
  %v79 = vld [vmem:[%s1 + $0x4] sm:$0xf]
  %v80 = vld [vmem:[%s1 + $0x8] sm:$0xf]
  %v81 = vld [vmem:[%s1 + $0xc] sm:$0xf]
  %v82 = vld [vmem:[%s1 + $0x10] sm:$0xf]
  %v83 = vld [vmem:[%s1 + $0x14] sm:$0xf]
  %v84 = vld [vmem:[%s1 + $0x18] sm:$0xf]
  %v85 = vld [vmem:[%s1 + $0x1c] sm:$0xf]
  %v86 = vld [vmem:[%s1 + $0x20] sm:$0xf]
  %v87 = vld [vmem:[%s1 + $0x24] sm:$0xf]
  %v88 = vld [vmem:[%s1 + $0x28] sm:$0xf]
  %v89 = vld [vmem:[%s1 + $0x2c] sm:$0xf]
  %v90 = vld [vmem:[%s1 + $0x30] sm:$0xf]
  %v91 = vld [vmem:[%s1 + $0x34] sm:$0xf]
  %v92 = vld [vmem:[%s1 + $0x38] sm:$0xf]
  %v93 = vld [vmem:[%s1 + $0x3c] sm:$0xf]
  %v94 = vld [vmem:[%s2] sm:$0xff]
  %v95 = vld [vmem:[%s2 + $0x8] sm:$0xff]
  %v112 = vunpack.c.l.b16 %v78
  %v113 = vunpack.c.l.b16 %v79
  %v114 = vunpack.c.l.b16 %v80
  %v115 = vunpack.c.l.b16 %v81
  %v116 = vunpack.c.l.b16 %v82
  %v117 = vunpack.c.l.b16 %v83
  %v118 = vunpack.c.l.b16 %v84
  %v119 = vunpack.c.l.b16 %v85
  %v120 = vunpack.c.l.b16 %v86
  %v121 = vunpack.c.l.b16 %v87
  %v122 = vunpack.c.l.b16 %v88
  %v123 = vunpack.c.l.b16 %v89
  %v124 = vunpack.c.l.b16 %v90
  %v125 = vunpack.c.l.b16 %v91
  %v126 = vunpack.c.l.b16 %v92
  %v127 = vunpack.c.l.b16 %v93
  %v128 = vpack.c.b16 %v113, %v112
  %v129 = vpack.c.b16 %v115, %v114
  %v130 = vpack.c.b16 %v117, %v116
  %v131 = vpack.c.b16 %v119, %v118
  %v132 = vpack.c.b16 %v121, %v120
  %v133 = vpack.c.b16 %v123, %v122
  %v134 = vpack.c.b16 %v125, %v124
  %v135 = vpack.c.b16 %v127, %v126
  %144 = vmatprep.subr.bf16.mxu0 0
  %145 = vmatpush1.bf16.msra.mxu0 %v128
  %146 = vmatprep.subr.bf16.mxu0 0
  %147 = vmatpush1.bf16.msra.mxu0 %v129
  %148 = vmatprep.subr.bf16.mxu0 0
  %149 = vmatpush1.bf16.msra.mxu0 %v130
  %150 = vmatprep.subr.bf16.mxu0 0
  %151 = vmatpush1.bf16.msra.mxu0 %v131
  %152 = vmatprep.subr.bf16.mxu0 0
  %153 = vmatpush1.bf16.msra.mxu0 %v132
  %154 = vmatprep.subr.bf16.mxu0 0
  %155 = vmatpush1.bf16.msra.mxu0 %v133
  %156 = vmatprep.subr.bf16.mxu0 0
  %157 = vmatpush1.bf16.msra.mxu0 %v134
  %158 = vmatprep.subr.bf16.mxu0 0
  %159 = vmatpush1.bf16.msra.mxu0 %v135
  %160 = vmatprep.subr.bf16.mxu0 0
  %161 = vmatpush1.bf16.msra.mxu0 0
  %162 = vmatprep.subr.bf16.mxu0 0
  %163 = vmatpush1.bf16.msra.mxu0 0
  %164 = vmatprep.subr.bf16.mxu0 0
  %165 = vmatpush1.bf16.msra.mxu0 0
  %166 = vmatprep.subr.bf16.mxu0 0
  %167 = vmatpush1.bf16.msra.mxu0 0
  %168 = vmatprep.subr.bf16.mxu0 0
  %169 = vmatpush1.bf16.msra.mxu0 0
  %170 = vmatprep.subr.bf16.mxu0 0
  %171 = vmatpush1.bf16.msra.mxu0 0
  %172 = vmatprep.subr.bf16.mxu0 0
  %173 = vmatpush1.bf16.msra.mxu0 0
  %174 = vmatprep.subr.bf16.mxu0 0
  %175 = vmatpush1.bf16.msra.mxu0 0
  %176 = vmatprep.mubr.bf16.mxu0 0
  %177 = vmatmul.mubr.bf16.gmra.mrb[0].mxu0 %v77
  %v178 = vpop.f32.mrb[0].mxu0
  %v179 = vadd.f32 %v94, %v178
  %v180 = vpop.f32.mrb[0].mxu0
  %v181 = vpop.f32.mrb[0].mxu0
  %v182 = vadd.f32 %v95, %v181
  %v183 = vpop.f32.mrb[0].mxu0
  %184 = vdwg.mxu0
  %v185 = vld [vmem:[%s3] sm:$0xff]
  %v186 = vld [vmem:[%s3 + $0x8] sm:$0xff]
  %v187 = vld [vmem:[%s3 + $0x10] sm:$0xff]
  %v188 = vld [vmem:[%s3 + $0x18] sm:$0xff]
  %v189 = vld [vmem:[%s3 + $0x20] sm:$0xff]
  %v190 = vld [vmem:[%s3 + $0x28] sm:$0xff]
  %v191 = vld [vmem:[%s3 + $0x30] sm:$0xff]
  %v192 = vld [vmem:[%s3 + $0x38] sm:$0xff]
  %v193 = vld [vmem:[%s4] sm:$0xff]
  %v194 = vld [vmem:[%s4 + $0x8] sm:$0xff]
  %v195 = vld [vmem:[%s4 + $0x10] sm:$0xff]
  %v196 = vld [vmem:[%s4 + $0x18] sm:$0xff]
  %v197 = vld [vmem:[%s4 + $0x20] sm:$0xff]
  %v198 = vld [vmem:[%s4 + $0x28] sm:$0xff]
  %v199 = vld [vmem:[%s4 + $0x30] sm:$0xff]
  %v200 = vld [vmem:[%s4 + $0x38] sm:$0xff]
  %v201 = vpack.c.bf16 %v182, %v179
  %v202 = vld [vmem:[%s5] sm:$0xff]
  %v203 = vld [vmem:[%s5 + $0x8] sm:$0xff]
  %v204 = vld [vmem:[%s5 + $0x10] sm:$0xff]
  %v205 = vld [vmem:[%s5 + $0x18] sm:$0xff]
  %v206 = vld [vmem:[%s5 + $0x20] sm:$0xff]
  %v207 = vld [vmem:[%s5 + $0x28] sm:$0xff]
  %v208 = vld [vmem:[%s5 + $0x30] sm:$0xff]
  %v209 = vld [vmem:[%s5 + $0x38] sm:$0xff]
  %v210 = vld [vmem:[%s6] sm:$0x3]
  %v212 = vlaneseq
  %v213 = vshrl.u32 %v212, 7
  %v214 = vsub.s32 0, %v213
  %v215 = vrot.slane %v210, %v214
  %v216 = vlaneseq
  %v217 = vshrl.u32 %v216, 7
  %v218 = vsub.s32 1, %v217
  %v219 = vrot.slane %v210, %v218
  %v230 = vunpack.c.l.b16 %v202
  %v231 = vunpack.c.h.b16 %v202
  %v232 = vunpack.c.l.b16 %v203
  %v233 = vunpack.c.h.b16 %v203
  %v234 = vunpack.c.l.b16 %v204
  %v235 = vunpack.c.h.b16 %v204
  %v236 = vunpack.c.l.b16 %v205
  %v237 = vunpack.c.h.b16 %v205
  %v238 = vunpack.c.l.b16 %v206
  %v239 = vunpack.c.h.b16 %v206
  %v240 = vunpack.c.l.b16 %v207
  %v241 = vunpack.c.h.b16 %v207
  %v242 = vunpack.c.l.b16 %v208
  %v243 = vunpack.c.h.b16 %v208
  %v244 = vunpack.c.l.b16 %v209
  %v245 = vunpack.c.h.b16 %v209
  %v246 = vpack.c.b16 %v232, %v230
  %v247 = vpack.c.b16 %v233, %v231
  %v248 = vpack.c.b16 %v236, %v234
  %v249 = vpack.c.b16 %v237, %v235
  %v250 = vpack.c.b16 %v240, %v238
  %v251 = vpack.c.b16 %v241, %v239
  %v252 = vpack.c.b16 %v244, %v242
  %v253 = vpack.c.b16 %v245, %v243
  %vm262 = vcmask 523264
  %v264 = vsel %vm262, %v201, 0
  %266 = vmatprep.subr.bf16.mxu0 %v247
  %267 = vmatpush1.bf16.msra.mxu0 %v246
  %268 = vmatprep.subr.bf16.mxu0 %v249
  %269 = vmatpush1.bf16.msra.mxu0 %v248
  %270 = vmatprep.subr.bf16.mxu0 %v251
  %271 = vmatpush1.bf16.msra.mxu0 %v250
  %272 = vmatprep.subr.bf16.mxu0 %v253
  %273 = vmatpush1.bf16.msra.mxu0 %v252
  %274 = vmatprep.subr.bf16.mxu0 0
  %275 = vmatpush1.bf16.msra.mxu0 0
  %276 = vmatprep.subr.bf16.mxu0 0
  %277 = vmatpush1.bf16.msra.mxu0 0
  %278 = vmatprep.subr.bf16.mxu0 0
  %279 = vmatpush1.bf16.msra.mxu0 0
  %280 = vmatprep.subr.bf16.mxu0 0
  %281 = vmatpush1.bf16.msra.mxu0 0
  %282 = vmatprep.subr.bf16.mxu0 0
  %283 = vmatpush1.bf16.msra.mxu0 0
  %284 = vmatprep.subr.bf16.mxu0 0
  %285 = vmatpush1.bf16.msra.mxu0 0
  %286 = vmatprep.subr.bf16.mxu0 0
  %287 = vmatpush1.bf16.msra.mxu0 0
  %288 = vmatprep.subr.bf16.mxu0 0
  %289 = vmatpush1.bf16.msra.mxu0 0
  %290 = vmatprep.subr.bf16.mxu0 0
  %291 = vmatpush1.bf16.msra.mxu0 0
  %292 = vmatprep.subr.bf16.mxu0 0
  %293 = vmatpush1.bf16.msra.mxu0 0
  %294 = vmatprep.subr.bf16.mxu0 0
  %295 = vmatpush1.bf16.msra.mxu0 0
  %296 = vmatprep.subr.bf16.mxu0 0
  %297 = vmatpush1.bf16.msra.mxu0 0
  %298 = vmatprep.mubr.bf16.mxu0 0
  %299 = vmatmul.mubr.bf16.gmra.mrb[0].mxu0 %v264
  %v300 = vpop.f32.mrb[0].mxu0
  %v301 = vadd.f32 %v215, %v300
  %v302 = vpop.f32.mrb[0].mxu0
  %v303 = vadd.f32 %v219, %v302
  %v304 = vpop.f32.mrb[0].mxu0
  %v305 = vadd.f32 %v215, %v304
  %v306 = vpop.f32.mrb[0].mxu0
  %v307 = vadd.f32 %v219, %v306
  %308 = vdwg.mxu0
  %v309 = vmul.f32 %v301, %v193
  %v310 = vmul.f32 %v305, %v194
  %v311 = vmul.f32 %v301, %v195
  %v312 = vmul.f32 %v305, %v196
  %v313 = vmul.f32 %v301, %v197
  %v314 = vmul.f32 %v305, %v198
  %v315 = vmul.f32 %v301, %v199
  %v316 = vmul.f32 %v305, %v200
  %v317 = vpack.c.bf16 %v310, %v309
  %v318 = vpack.c.bf16 %v312, %v311
  %v319 = vpack.c.bf16 %v314, %v313
  %v320 = vpack.c.bf16 %v316, %v315
  %v321 = vpack.c.bf16 %v305, %v301
  %323 = vrot.lane.b32.xlu0 %v321, 64
  %v324 = vpop.permute.xlu0 %323
  %v326 = vsel %vm262, %v317, 0
  %v329 = vsel %vm262, %v318, 0
  %v332 = vsel %vm262, %v319, 0
  %v335 = vsel %vm262, %v320, 0
  %v338 = vsel %vm262, %v324, 0
  %340 = vmatprep.subr.bf16.mxu0 0
  %341 = vmatpush1.bf16.xpose.msra.mxu0 %v338
  %342 = vmatprep.subr.bf16.mxu0 0
  %343 = vmatpush1.bf16.xpose.msra.mxu0 0
  %344 = vmatprep.subr.bf16.mxu0 0
  %345 = vmatpush1.bf16.xpose.msra.mxu0 0
  %346 = vmatprep.subr.bf16.mxu0 0
  %347 = vmatpush1.bf16.xpose.msra.mxu0 0
  %348 = vmatprep.subr.bf16.mxu0 0
  %349 = vmatpush1.bf16.xpose.msra.mxu0 0
  %350 = vmatprep.subr.bf16.mxu0 0
  %351 = vmatpush1.bf16.xpose.msra.mxu0 0
  %352 = vmatprep.subr.bf16.mxu0 0
  %353 = vmatpush1.bf16.xpose.msra.mxu0 0
  %354 = vmatprep.subr.bf16.mxu0 0
  %355 = vmatpush1.bf16.xpose.msra.mxu0 0
  %356 = vmatprep.subr.bf16.mxu0 0
  %357 = vmatpush1.bf16.xpose.msra.mxu0 0
  %358 = vmatprep.subr.bf16.mxu0 0
  %359 = vmatpush1.bf16.xpose.msra.mxu0 0
  %360 = vmatprep.subr.bf16.mxu0 0
  %361 = vmatpush1.bf16.xpose.msra.mxu0 0
  %362 = vmatprep.subr.bf16.mxu0 0
  %363 = vmatpush1.bf16.xpose.msra.mxu0 0
  %364 = vmatprep.subr.bf16.mxu0 0
  %365 = vmatpush1.bf16.xpose.msra.mxu0 0
  %366 = vmatprep.subr.bf16.mxu0 0
  %367 = vmatpush1.bf16.xpose.msra.mxu0 0
  %368 = vmatprep.subr.bf16.mxu0 0
  %369 = vmatpush1.bf16.xpose.msra.mxu0 0
  %370 = vmatprep.subr.bf16.mxu0 0
  %371 = vmatpush1.bf16.xpose.msra.mxu0 0
  %372 = vmatprep.mubr.bf16.mxu0 0
  %373 = vmatmul.mubr.bf16.gmra.mrb[0].mxu0 %v326
  %v374 = vpop.f32.mrb[0].mxu0
  %v375 = vadd.f32 %v185, %v374
  %v376 = vpop.f32.mrb[0].mxu0
  %v377 = vpop.f32.mrb[0].mxu0
  %v378 = vadd.f32 %v186, %v377
  %v379 = vpop.f32.mrb[0].mxu0
  %380 = vmatprep.mubr.bf16.mxu0 0
  %381 = vmatmul.mubr.bf16.gmra.mrb[0].mxu0 %v329
  %v382 = vpop.f32.mrb[0].mxu0
  %v383 = vadd.f32 %v187, %v382
  %v384 = vpop.f32.mrb[0].mxu0
  %v385 = vpop.f32.mrb[0].mxu0
  %v386 = vadd.f32 %v188, %v385
  %v387 = vpop.f32.mrb[0].mxu0
  %388 = vmatprep.mubr.bf16.mxu0 0
  %389 = vmatmul.mubr.bf16.gmra.mrb[0].mxu0 %v332
  %v390 = vpop.f32.mrb[0].mxu0
  %v391 = vadd.f32 %v189, %v390
  %v392 = vpop.f32.mrb[0].mxu0
  %v393 = vpop.f32.mrb[0].mxu0
  %v394 = vadd.f32 %v190, %v393
  %v395 = vpop.f32.mrb[0].mxu0
  %396 = vmatprep.mubr.bf16.mxu0 0
  %397 = vmatmul.mubr.bf16.gmra.mrb[0].mxu0 %v335
  %v398 = vpop.f32.mrb[0].mxu0
  %v399 = vadd.f32 %v191, %v398
  %v400 = vpop.f32.mrb[0].mxu0
  %v401 = vpop.f32.mrb[0].mxu0
  %v402 = vadd.f32 %v192, %v401
  %v403 = vpop.f32.mrb[0].mxu0
  %404 = vdwg.mxu0
  %vm405 = vcmask 130048
  %v406 = vsel %vm405, %v375, -inf
  %407 = vmax.xlane.f32.xlu0 %v406
  %v408 = vpop.xlane.xlu0 %407
  %v409 = vsel %vm405, %v378, -inf
  %410 = vmax.xlane.f32.xlu0 %v409
  %v411 = vpop.xlane.xlu0 %410
  %v412 = vsel %vm405, %v383, -inf
  %413 = vmax.xlane.f32.xlu0 %v412
  %v414 = vpop.xlane.xlu0 %413
  %v415 = vsel %vm405, %v386, -inf
  %416 = vmax.xlane.f32.xlu0 %v415
  %v417 = vpop.xlane.xlu0 %416
  %v418 = vsel %vm405, %v391, -inf
  %419 = vmax.xlane.f32.xlu0 %v418
  %v420 = vpop.xlane.xlu0 %419
  %v421 = vsel %vm405, %v394, -inf
  %422 = vmax.xlane.f32.xlu0 %v421
  %v423 = vpop.xlane.xlu0 %422
  %v424 = vsel %vm405, %v399, -inf
  %425 = vmax.xlane.f32.xlu0 %v424
  %v426 = vpop.xlane.xlu0 %425
  %v427 = vsel %vm405, %v402, -inf
  %428 = vmax.xlane.f32.xlu0 %v427
  %v429 = vpop.xlane.xlu0 %428
  %v430 = vsub.f32 %v375, %v408
  %v431 = vsub.f32 %v378, %v411
  %v432 = vsub.f32 %v383, %v414
  %v433 = vsub.f32 %v386, %v417
  %v434 = vsub.f32 %v391, %v420
  %v435 = vsub.f32 %v394, %v423
  %v436 = vsub.f32 %v399, %v426
  %v437 = vsub.f32 %v402, %v429
  %v438 = vmul.f32 %v430, 1.442695
  %v439 = vpow.pop %v438
  %v440 = vmul.f32 %v431, 1.442695
  %v441 = vpow.pop %v440
  %v442 = vmul.f32 %v432, 1.442695
  %v443 = vpow.pop %v442
  %v444 = vmul.f32 %v433, 1.442695
  %v445 = vpow.pop %v444
  %v446 = vmul.f32 %v434, 1.442695
  %v447 = vpow.pop %v446
  %v448 = vmul.f32 %v435, 1.442695
  %v449 = vpow.pop %v448
  %v450 = vmul.f32 %v436, 1.442695
  %v451 = vpow.pop %v450
  %v452 = vmul.f32 %v437, 1.442695
  %v453 = vpow.pop %v452
  %v454 = vsel %vm405, %v439, 0.0
  %455 = vadd.xlane.f32.xlu0 %v454
  %v456 = vpop.xlane.xlu0 %455
  %v457 = vsel %vm405, %v441, 0.0
  %458 = vadd.xlane.f32.xlu0 %v457
  %v459 = vpop.xlane.xlu0 %458
  %v460 = vsel %vm405, %v443, 0.0
  %461 = vadd.xlane.f32.xlu0 %v460
  %v462 = vpop.xlane.xlu0 %461
  %v463 = vsel %vm405, %v445, 0.0
  %464 = vadd.xlane.f32.xlu0 %v463
  %v465 = vpop.xlane.xlu0 %464
  %v466 = vsel %vm405, %v447, 0.0
  %467 = vadd.xlane.f32.xlu0 %v466
  %v468 = vpop.xlane.xlu0 %467
  %v469 = vsel %vm405, %v449, 0.0
  %470 = vadd.xlane.f32.xlu0 %v469
  %v471 = vpop.xlane.xlu0 %470
  %v472 = vsel %vm405, %v451, 0.0
  %473 = vadd.xlane.f32.xlu0 %v472
  %v474 = vpop.xlane.xlu0 %473
  %v475 = vsel %vm405, %v453, 0.0
  %476 = vadd.xlane.f32.xlu0 %v475
  %v477 = vpop.xlane.xlu0 %476
  %v478 = vrcp.pop %v456
  %v479 = vrcp.pop %v459
  %v480 = vrcp.pop %v462
  %v481 = vrcp.pop %v465
  %v482 = vrcp.pop %v468
  %v483 = vrcp.pop %v471
  %v484 = vrcp.pop %v474
  %v485 = vrcp.pop %v477
  %v486 = vmul.f32 %v439, %v478
  %v487 = vmul.f32 %v441, %v479
  %v488 = vmul.f32 %v443, %v480
  %v489 = vmul.f32 %v445, %v481
  %v490 = vmul.f32 %v447, %v482
  %v491 = vmul.f32 %v449, %v483
  %v492 = vmul.f32 %v451, %v484
  %v493 = vmul.f32 %v453, %v485
  %v494 = vpack.c.bf16 %v487, %v486
  %v495 = vpack.c.bf16 %v489, %v488
  %v496 = vpack.c.bf16 %v491, %v490
  %v497 = vpack.c.bf16 %v493, %v492
  %v498 = vpack.c.bf16 %v307, %v303
  %v500 = vsel %vm405, %v494, 0
  %v503 = vsel %vm405, %v495, 0
  %v506 = vsel %vm405, %v496, 0
  %v509 = vsel %vm405, %v497, 0
  %511 = vmatprep.subr.bf16.mxu0 0
  %512 = vmatpush1.bf16.msra.mxu0 %v498
  %513 = vmatprep.subr.bf16.mxu0 0
  %514 = vmatpush1.bf16.msra.mxu0 0
  %515 = vmatprep.subr.bf16.mxu0 0
  %516 = vmatpush1.bf16.msra.mxu0 0
  %517 = vmatprep.subr.bf16.mxu0 0
  %518 = vmatpush1.bf16.msra.mxu0 0
  %519 = vmatprep.subr.bf16.mxu0 0
  %520 = vmatpush1.bf16.msra.mxu0 0
  %521 = vmatprep.subr.bf16.mxu0 0
  %522 = vmatpush1.bf16.msra.mxu0 0
  %523 = vmatprep.subr.bf16.mxu0 0
  %524 = vmatpush1.bf16.msra.mxu0 0
  %525 = vmatprep.subr.bf16.mxu0 0
  %526 = vmatpush1.bf16.msra.mxu0 0
  %527 = vmatprep.subr.bf16.mxu0 0
  %528 = vmatpush1.bf16.msra.mxu0 0
  %529 = vmatprep.subr.bf16.mxu0 0
  %530 = vmatpush1.bf16.msra.mxu0 0
  %531 = vmatprep.subr.bf16.mxu0 0
  %532 = vmatpush1.bf16.msra.mxu0 0
  %533 = vmatprep.subr.bf16.mxu0 0
  %534 = vmatpush1.bf16.msra.mxu0 0
  %535 = vmatprep.subr.bf16.mxu0 0
  %536 = vmatpush1.bf16.msra.mxu0 0
  %537 = vmatprep.subr.bf16.mxu0 0
  %538 = vmatpush1.bf16.msra.mxu0 0
  %539 = vmatprep.subr.bf16.mxu0 0
  %540 = vmatpush1.bf16.msra.mxu0 0
  %541 = vmatprep.subr.bf16.mxu0 0
  %542 = vmatpush1.bf16.msra.mxu0 0
  %543 = vmatprep.mubr.bf16.mxu0 0
  %544 = vmatmul.mubr.bf16.gmra.mrb[0].mxu0 %v500
  %v545 = vpop.f32.mrb[0].mxu0
  %v546 = vadd.f32 0.0, %v545
  %v547 = vpop.f32.mrb[0].mxu0
  %v548 = vpop.f32.mrb[0].mxu0
  %v549 = vadd.f32 0.0, %v548
  %v550 = vpop.f32.mrb[0].mxu0
  %551 = vmatprep.mubr.bf16.mxu0 0
  %552 = vmatmul.mubr.bf16.gmra.mrb[0].mxu0 %v503
  %v553 = vpop.f32.mrb[0].mxu0
  %v554 = vadd.f32 0.0, %v553
  %v555 = vpop.f32.mrb[0].mxu0
  %v556 = vpop.f32.mrb[0].mxu0
  %v557 = vadd.f32 0.0, %v556
  %v558 = vpop.f32.mrb[0].mxu0
  %559 = vmatprep.mubr.bf16.mxu0 0
  %560 = vmatmul.mubr.bf16.gmra.mrb[0].mxu0 %v506
  %v561 = vpop.f32.mrb[0].mxu0
  %v562 = vadd.f32 0.0, %v561
  %v563 = vpop.f32.mrb[0].mxu0
  %v564 = vpop.f32.mrb[0].mxu0
  %v565 = vadd.f32 0.0, %v564
  %v566 = vpop.f32.mrb[0].mxu0
  %567 = vmatprep.mubr.bf16.mxu0 0
  %568 = vmatmul.mubr.bf16.gmra.mrb[0].mxu0 %v509
  %v569 = vpop.f32.mrb[0].mxu0
  %v570 = vadd.f32 0.0, %v569
  %v571 = vpop.f32.mrb[0].mxu0
  %v572 = vpop.f32.mrb[0].mxu0
  %v573 = vadd.f32 0.0, %v572
  %v574 = vpop.f32.mrb[0].mxu0
  %575 = vdwg.mxu0
  %v576 = vmul.f32 %v546, %v193
  %v577 = vmul.f32 %v549, %v194
  %v578 = vmul.f32 %v554, %v195
  %v579 = vmul.f32 %v557, %v196
  %v580 = vmul.f32 %v562, %v197
  %v581 = vmul.f32 %v565, %v198
  %v582 = vmul.f32 %v570, %v199
  %v583 = vmul.f32 %v573, %v200
  %v584 = vadd.f32 %v576, %v578
  %v585 = vadd.f32 %v577, %v579
  %v586 = vadd.f32 %v584, %v580
  %v587 = vadd.f32 %v585, %v581
  %v588 = vadd.f32 %v586, %v582
  %v589 = vadd.f32 %v587, %v583
  %v590 = vpack.c.bf16 %v589, %v588
  %v591 = vld [vmem:[%s7] sm:$0xf]
  %v592 = vld [vmem:[%s7 + $0x4] sm:$0xf]
  %v593 = vld [vmem:[%s7 + $0x8] sm:$0xf]
  %v594 = vld [vmem:[%s7 + $0xc] sm:$0xf]
  %v595 = vld [vmem:[%s7 + $0x10] sm:$0xf]
  %v596 = vld [vmem:[%s7 + $0x14] sm:$0xf]
  %v597 = vld [vmem:[%s7 + $0x18] sm:$0xf]
  %v598 = vld [vmem:[%s7 + $0x1c] sm:$0xf]
  %v599 = vld [vmem:[%s8] sm:$0x1]
  %v601 = vlaneseq
  %v602 = vshrl.u32 %v601, 7
  %v603 = vsub.s32 0, %v602
  %v604 = vrot.slane %v599, %v603
  %v614 = vunpack.c.l.b16 %v591
  %v615 = vunpack.c.l.b16 %v592
  %v616 = vunpack.c.l.b16 %v593
  %v617 = vunpack.c.l.b16 %v594
  %v618 = vunpack.c.l.b16 %v595
  %v619 = vunpack.c.l.b16 %v596
  %v620 = vunpack.c.l.b16 %v597
  %v621 = vunpack.c.l.b16 %v598
  %v622 = vpack.c.b16 %v615, %v614
  %v623 = vpack.c.b16 %v617, %v616
  %v624 = vpack.c.b16 %v619, %v618
  %v625 = vpack.c.b16 %v621, %v620
  %v631 = vsel %vm262, %v590, 0
  %633 = vmatprep.subr.bf16.mxu0 0
  %634 = vmatpush1.bf16.msra.mxu0 %v622
  %635 = vmatprep.subr.bf16.mxu0 0
  %636 = vmatpush1.bf16.msra.mxu0 %v623
  %637 = vmatprep.subr.bf16.mxu0 0
  %638 = vmatpush1.bf16.msra.mxu0 %v624
  %639 = vmatprep.subr.bf16.mxu0 0
  %640 = vmatpush1.bf16.msra.mxu0 %v625
  %641 = vmatprep.subr.bf16.mxu0 0
  %642 = vmatpush1.bf16.msra.mxu0 0
  %643 = vmatprep.subr.bf16.mxu0 0
  %644 = vmatpush1.bf16.msra.mxu0 0
  %645 = vmatprep.subr.bf16.mxu0 0
  %646 = vmatpush1.bf16.msra.mxu0 0
  %647 = vmatprep.subr.bf16.mxu0 0
  %648 = vmatpush1.bf16.msra.mxu0 0
  %649 = vmatprep.subr.bf16.mxu0 0
  %650 = vmatpush1.bf16.msra.mxu0 0
  %651 = vmatprep.subr.bf16.mxu0 0
  %652 = vmatpush1.bf16.msra.mxu0 0
  %653 = vmatprep.subr.bf16.mxu0 0
  %654 = vmatpush1.bf16.msra.mxu0 0
  %655 = vmatprep.subr.bf16.mxu0 0
  %656 = vmatpush1.bf16.msra.mxu0 0
  %657 = vmatprep.subr.bf16.mxu0 0
  %658 = vmatpush1.bf16.msra.mxu0 0
  %659 = vmatprep.subr.bf16.mxu0 0
  %660 = vmatpush1.bf16.msra.mxu0 0
  %661 = vmatprep.subr.bf16.mxu0 0
  %662 = vmatpush1.bf16.msra.mxu0 0
  %663 = vmatprep.subr.bf16.mxu0 0
  %664 = vmatpush1.bf16.msra.mxu0 0
  %665 = vmatprep.mubr.bf16.mxu0 0
  %666 = vmatmul.mubr.bf16.gmra.mrb[0].mxu0 %v631
  %v667 = vpop.f32.mrb[0].mxu0
  %v668 = vadd.f32 %v604, %v667
  %v669 = vpop.f32.mrb[0].mxu0
  %v670 = vpop.f32.mrb[0].mxu0
  %v671 = vadd.f32 %v604, %v670
  %v672 = vpop.f32.mrb[0].mxu0
  %673 = vdwg.mxu0
  %v674 = vadd.f32 %v179, %v668
  %v675 = vadd.f32 %v182, %v671
  %v676 = vld [vmem:[%s9] sm:$0x1]
  %v677 = vld [vmem:[%s10] sm:$0x1]
  %v678 = vsel %vm262, %v674, 0.0
  %679 = vadd.xlane.f32.xlu0 %v678
  %v680 = vpop.xlane.xlu0 %679
  %v681 = vsel %vm262, %v675, 0.0
  %682 = vadd.xlane.f32.xlu0 %v681
  %v683 = vpop.xlane.xlu0 %682
  %v684 = vrcp.pop 64.0
  %v685 = vmul.f32 %v680, %v684
  %v686 = vmul.f32 %v683, %v684
  %v687 = vmul.f32 %v674, %v674
  %v688 = vmul.f32 %v675, %v675
  %v689 = vsel %vm262, %v687, 0.0
  %690 = vadd.xlane.f32.xlu0 %v689
  %v691 = vpop.xlane.xlu0 %690
  %v692 = vsel %vm262, %v688, 0.0
  %693 = vadd.xlane.f32.xlu0 %v692
  %v694 = vpop.xlane.xlu0 %693
  %v695 = vmul.f32 %v691, %v684
  %v696 = vmul.f32 %v694, %v684
  %v697 = vmul.f32 %v685, %v685
  %v698 = vmul.f32 %v686, %v686
  %v699 = vsub.f32 %v695, %v697
  %v700 = vsub.f32 %v696, %v698
  %v701 = vsub.f32 %v674, %v685
  %v702 = vsub.f32 %v675, %v686
  %v703 = vadd.f32 %v699, 1e-05
  %v704 = vadd.f32 %v700, 1e-05
  %v705 = vrsqrt.pop %v703
  %v706 = vrsqrt.pop %v704
  %v707 = vmul.f32 %v701, %v705
  %v708 = vmul.f32 %v702, %v706
  %v710 = vlaneseq
  %v711 = vshrl.u32 %v710, 7
  %v712 = vsub.s32 0, %v711
  %v713 = vrot.slane %v676, %v712
  %v715 = vmul.f32 %v707, %v713
  %v716 = vmul.f32 %v708, %v713
  %v718 = vlaneseq
  %v719 = vshrl.u32 %v718, 7
  %v720 = vsub.s32 0, %v719
  %v721 = vrot.slane %v677, %v720
  %v723 = vadd.f32 %v715, %v721
  %v724 = vadd.f32 %v716, %v721
  %v725 = vpack.c.bf16 %v724, %v723
  %v726 = vld [vmem:[%s11] sm:$0xff]
  %v727 = vld [vmem:[%s11 + $0x8] sm:$0xff]
  %v728 = vld [vmem:[%s11 + $0x10] sm:$0xff]
  %v729 = vld [vmem:[%s11 + $0x18] sm:$0xff]
  %v730 = vld [vmem:[%s11 + $0x20] sm:$0xff]
  %v731 = vld [vmem:[%s11 + $0x28] sm:$0xff]
  %v732 = vld [vmem:[%s11 + $0x30] sm:$0xff]
  %v733 = vld [vmem:[%s11 + $0x38] sm:$0xff]
  %v734 = vld [vmem:[%s12] sm:$0x3]
  %v736 = vlaneseq
  %v737 = vshrl.u32 %v736, 7
  %v738 = vsub.s32 0, %v737
  %v739 = vrot.slane %v734, %v738
  %v740 = vlaneseq
  %v741 = vshrl.u32 %v740, 7
  %v742 = vsub.s32 1, %v741
  %v743 = vrot.slane %v734, %v742
  %v754 = vunpack.c.l.b16 %v726
  %v755 = vunpack.c.h.b16 %v726
  %v756 = vunpack.c.l.b16 %v727
  %v757 = vunpack.c.h.b16 %v727
  %v758 = vunpack.c.l.b16 %v728
  %v759 = vunpack.c.h.b16 %v728
  %v760 = vunpack.c.l.b16 %v729
  %v761 = vunpack.c.h.b16 %v729
  %v762 = vunpack.c.l.b16 %v730
  %v763 = vunpack.c.h.b16 %v730
  %v764 = vunpack.c.l.b16 %v731
  %v765 = vunpack.c.h.b16 %v731
  %v766 = vunpack.c.l.b16 %v732
  %v767 = vunpack.c.h.b16 %v732
  %v768 = vunpack.c.l.b16 %v733
  %v769 = vunpack.c.h.b16 %v733
  %v770 = vpack.c.b16 %v756, %v754
  %v771 = vpack.c.b16 %v757, %v755
  %v772 = vpack.c.b16 %v760, %v758
  %v773 = vpack.c.b16 %v761, %v759
  %v774 = vpack.c.b16 %v764, %v762
  %v775 = vpack.c.b16 %v765, %v763
  %v776 = vpack.c.b16 %v768, %v766
  %v777 = vpack.c.b16 %v769, %v767
  %v787 = vsel %vm262, %v725, 0
  %789 = vmatprep.subr.bf16.mxu0 %v771
  %790 = vmatpush1.bf16.msra.mxu0 %v770
  %791 = vmatprep.subr.bf16.mxu0 %v773
  %792 = vmatpush1.bf16.msra.mxu0 %v772
  %793 = vmatprep.subr.bf16.mxu0 %v775
  %794 = vmatpush1.bf16.msra.mxu0 %v774
  %795 = vmatprep.subr.bf16.mxu0 %v777
  %796 = vmatpush1.bf16.msra.mxu0 %v776
  %797 = vmatprep.subr.bf16.mxu0 0
  %798 = vmatpush1.bf16.msra.mxu0 0
  %799 = vmatprep.subr.bf16.mxu0 0
  %800 = vmatpush1.bf16.msra.mxu0 0
  %801 = vmatprep.subr.bf16.mxu0 0
  %802 = vmatpush1.bf16.msra.mxu0 0
  %803 = vmatprep.subr.bf16.mxu0 0
  %804 = vmatpush1.bf16.msra.mxu0 0
  %805 = vmatprep.subr.bf16.mxu0 0
  %806 = vmatpush1.bf16.msra.mxu0 0
  %807 = vmatprep.subr.bf16.mxu0 0
  %808 = vmatpush1.bf16.msra.mxu0 0
  %809 = vmatprep.subr.bf16.mxu0 0
  %810 = vmatpush1.bf16.msra.mxu0 0
  %811 = vmatprep.subr.bf16.mxu0 0
  %812 = vmatpush1.bf16.msra.mxu0 0
  %813 = vmatprep.subr.bf16.mxu0 0
  %814 = vmatpush1.bf16.msra.mxu0 0
  %815 = vmatprep.subr.bf16.mxu0 0
  %816 = vmatpush1.bf16.msra.mxu0 0
  %817 = vmatprep.subr.bf16.mxu0 0
  %818 = vmatpush1.bf16.msra.mxu0 0
  %819 = vmatprep.subr.bf16.mxu0 0
  %820 = vmatpush1.bf16.msra.mxu0 0
  %821 = vmatprep.mubr.bf16.mxu0 0
  %822 = vmatmul.mubr.bf16.gmra.mrb[0].mxu0 %v787
  %v823 = vpop.f32.mrb[0].mxu0
  %v824 = vadd.f32 %v739, %v823
  %v825 = vpop.f32.mrb[0].mxu0
  %v826 = vadd.f32 %v743, %v825
  %v827 = vpop.f32.mrb[0].mxu0
  %v828 = vadd.f32 %v739, %v827
  %v829 = vpop.f32.mrb[0].mxu0
  %v830 = vadd.f32 %v743, %v829
  %831 = vdwg.mxu0
  %v832 = vmax.f32 %v824, 0.0
  %v833 = vmax.f32 %v826, 0.0
  %v834 = vmax.f32 %v828, 0.0
  %v835 = vmax.f32 %v830, 0.0
  %v836 = vpack.c.bf16 %v834, %v832
  %v837 = vpack.c.bf16 %v835, %v833
  %v838 = vld [vmem:[%s13] sm:$0xf]
  %v839 = vld [vmem:[%s13 + $0x4] sm:$0xf]
  %v840 = vld [vmem:[%s13 + $0x8] sm:$0xf]
  %v841 = vld [vmem:[%s13 + $0xc] sm:$0xf]
  %v842 = vld [vmem:[%s13 + $0x10] sm:$0xf]
  %v843 = vld [vmem:[%s13 + $0x14] sm:$0xf]
  %v844 = vld [vmem:[%s13 + $0x18] sm:$0xf]
  %v845 = vld [vmem:[%s13 + $0x1c] sm:$0xf]
  %v846 = vld [vmem:[%s13 + $0x20] sm:$0xf]
  %v847 = vld [vmem:[%s13 + $0x24] sm:$0xf]
  %v848 = vld [vmem:[%s13 + $0x28] sm:$0xf]
  %v849 = vld [vmem:[%s13 + $0x2c] sm:$0xf]
  %v850 = vld [vmem:[%s13 + $0x30] sm:$0xf]
  %v851 = vld [vmem:[%s13 + $0x34] sm:$0xf]
  %v852 = vld [vmem:[%s13 + $0x38] sm:$0xf]
  %v853 = vld [vmem:[%s13 + $0x3c] sm:$0xf]
  %v854 = vld [vmem:[%s13 + $0x40] sm:$0xf]
  %v855 = vld [vmem:[%s13 + $0x44] sm:$0xf]
  %v856 = vld [vmem:[%s13 + $0x48] sm:$0xf]
  %v857 = vld [vmem:[%s13 + $0x4c] sm:$0xf]
  %v858 = vld [vmem:[%s13 + $0x50] sm:$0xf]
  %v859 = vld [vmem:[%s13 + $0x54] sm:$0xf]
  %v860 = vld [vmem:[%s13 + $0x58] sm:$0xf]
  %v861 = vld [vmem:[%s13 + $0x5c] sm:$0xf]
  %v862 = vld [vmem:[%s13 + $0x60] sm:$0xf]
  %v863 = vld [vmem:[%s13 + $0x64] sm:$0xf]
  %v864 = vld [vmem:[%s13 + $0x68] sm:$0xf]
  %v865 = vld [vmem:[%s13 + $0x6c] sm:$0xf]
  %v866 = vld [vmem:[%s13 + $0x70] sm:$0xf]
  %v867 = vld [vmem:[%s13 + $0x74] sm:$0xf]
  %v868 = vld [vmem:[%s13 + $0x78] sm:$0xf]
  %v869 = vld [vmem:[%s13 + $0x7c] sm:$0xf]
  %v870 = vld [vmem:[%s14] sm:$0x1]
  %v872 = vlaneseq
  %v873 = vshrl.u32 %v872, 7
  %v874 = vsub.s32 0, %v873
  %v875 = vrot.slane %v870, %v874
  %v909 = vunpack.c.l.b16 %v838
  %v910 = vunpack.c.l.b16 %v839
  %v911 = vunpack.c.l.b16 %v840
  %v912 = vunpack.c.l.b16 %v841
  %v913 = vunpack.c.l.b16 %v842
  %v914 = vunpack.c.l.b16 %v843
  %v915 = vunpack.c.l.b16 %v844
  %v916 = vunpack.c.l.b16 %v845
  %v917 = vunpack.c.l.b16 %v846
  %v918 = vunpack.c.l.b16 %v847
  %v919 = vunpack.c.l.b16 %v848
  %v920 = vunpack.c.l.b16 %v849
  %v921 = vunpack.c.l.b16 %v850
  %v922 = vunpack.c.l.b16 %v851
  %v923 = vunpack.c.l.b16 %v852
  %v924 = vunpack.c.l.b16 %v853
  %v925 = vunpack.c.l.b16 %v854
  %v926 = vunpack.c.l.b16 %v855
  %v927 = vunpack.c.l.b16 %v856
  %v928 = vunpack.c.l.b16 %v857
  %v929 = vunpack.c.l.b16 %v858
  %v930 = vunpack.c.l.b16 %v859
  %v931 = vunpack.c.l.b16 %v860
  %v932 = vunpack.c.l.b16 %v861
  %v933 = vunpack.c.l.b16 %v862
  %v934 = vunpack.c.l.b16 %v863
  %v935 = vunpack.c.l.b16 %v864
  %v936 = vunpack.c.l.b16 %v865
  %v937 = vunpack.c.l.b16 %v866
  %v938 = vunpack.c.l.b16 %v867
  %v939 = vunpack.c.l.b16 %v868
  %v940 = vunpack.c.l.b16 %v869
  %v941 = vpack.c.b16 %v910, %v909
  %v942 = vpack.c.b16 %v912, %v911
  %v943 = vpack.c.b16 %v914, %v913
  %v944 = vpack.c.b16 %v916, %v915
  %v945 = vpack.c.b16 %v918, %v917
  %v946 = vpack.c.b16 %v920, %v919
  %v947 = vpack.c.b16 %v922, %v921
  %v948 = vpack.c.b16 %v924, %v923
  %v949 = vpack.c.b16 %v926, %v925
  %v950 = vpack.c.b16 %v928, %v927
  %v951 = vpack.c.b16 %v930, %v929
  %v952 = vpack.c.b16 %v932, %v931
  %v953 = vpack.c.b16 %v934, %v933
  %v954 = vpack.c.b16 %v936, %v935
  %v955 = vpack.c.b16 %v938, %v937
  %v956 = vpack.c.b16 %v940, %v939
  %973 = vmatprep.subr.bf16.mxu0 0
  %974 = vmatpush1.bf16.msra.mxu0 %v941
  %975 = vmatprep.subr.bf16.mxu0 0
  %976 = vmatpush1.bf16.msra.mxu0 %v942
  %977 = vmatprep.subr.bf16.mxu0 0
  %978 = vmatpush1.bf16.msra.mxu0 %v943
  %979 = vmatprep.subr.bf16.mxu0 0
  %980 = vmatpush1.bf16.msra.mxu0 %v944
  %981 = vmatprep.subr.bf16.mxu0 0
  %982 = vmatpush1.bf16.msra.mxu0 %v945
  %983 = vmatprep.subr.bf16.mxu0 0
  %984 = vmatpush1.bf16.msra.mxu0 %v946
  %985 = vmatprep.subr.bf16.mxu0 0
  %986 = vmatpush1.bf16.msra.mxu0 %v947
  %987 = vmatprep.subr.bf16.mxu0 0
  %988 = vmatpush1.bf16.msra.mxu0 %v948
  %989 = vmatprep.subr.bf16.mxu0 0
  %990 = vmatpush1.bf16.msra.mxu0 %v949
  %991 = vmatprep.subr.bf16.mxu0 0
  %992 = vmatpush1.bf16.msra.mxu0 %v950
  %993 = vmatprep.subr.bf16.mxu0 0
  %994 = vmatpush1.bf16.msra.mxu0 %v951
  %995 = vmatprep.subr.bf16.mxu0 0
  %996 = vmatpush1.bf16.msra.mxu0 %v952
  %997 = vmatprep.subr.bf16.mxu0 0
  %998 = vmatpush1.bf16.msra.mxu0 %v953
  %999 = vmatprep.subr.bf16.mxu0 0
  %1000 = vmatpush1.bf16.msra.mxu0 %v954
  %1001 = vmatprep.subr.bf16.mxu0 0
  %1002 = vmatpush1.bf16.msra.mxu0 %v955
  %1003 = vmatprep.subr.bf16.mxu0 0
  %1004 = vmatpush1.bf16.msra.mxu0 %v956
  %1005 = vmatprep.mubr.bf16.mxu0 %v837
  %1006 = vmatmul.mubr.bf16.gmra.mrb[0].mxu0 %v836
  %v1007 = vpop.f32.mrb[0].mxu0
  %v1008 = vadd.f32 %v875, %v1007
  %v1009 = vpop.f32.mrb[0].mxu0
  %v1010 = vpop.f32.mrb[0].mxu0
  %v1011 = vadd.f32 %v875, %v1010
  %v1012 = vpop.f32.mrb[0].mxu0
  %1013 = vdwg.mxu0
  %v1014 = vadd.f32 %v723, %v1008
  %v1015 = vadd.f32 %v724, %v1011
  %v1016 = vld [vmem:[%s15] sm:$0x1]
  %v1017 = vld [vmem:[%s16] sm:$0x1]
  %v1018 = vsel %vm262, %v1014, 0.0
  %1019 = vadd.xlane.f32.xlu0 %v1018
  %v1020 = vpop.xlane.xlu0 %1019
  %v1021 = vsel %vm262, %v1015, 0.0
  %1022 = vadd.xlane.f32.xlu0 %v1021
  %v1023 = vpop.xlane.xlu0 %1022
  %v1024 = vmul.f32 %v1020, %v684
  %v1025 = vmul.f32 %v1023, %v684
  %v1026 = vmul.f32 %v1014, %v1014
  %v1027 = vmul.f32 %v1015, %v1015
  %v1028 = vsel %vm262, %v1026, 0.0
  %1029 = vadd.xlane.f32.xlu0 %v1028
  %v1030 = vpop.xlane.xlu0 %1029
  %v1031 = vsel %vm262, %v1027, 0.0
  %1032 = vadd.xlane.f32.xlu0 %v1031
  %v1033 = vpop.xlane.xlu0 %1032
  %v1034 = vmul.f32 %v1030, %v684
  %v1035 = vmul.f32 %v1033, %v684
  %v1036 = vmul.f32 %v1024, %v1024
  %v1037 = vmul.f32 %v1025, %v1025
  %v1038 = vsub.f32 %v1034, %v1036
  %v1039 = vsub.f32 %v1035, %v1037
  %v1040 = vsub.f32 %v1014, %v1024
  %v1041 = vsub.f32 %v1015, %v1025
  %v1042 = vadd.f32 %v1038, 1e-05
  %v1043 = vadd.f32 %v1039, 1e-05
  %v1044 = vrsqrt.pop %v1042
  %v1045 = vrsqrt.pop %v1043
  %v1046 = vmul.f32 %v1040, %v1044
  %v1047 = vmul.f32 %v1041, %v1045
  %v1049 = vlaneseq
  %v1050 = vshrl.u32 %v1049, 7
  %v1051 = vsub.s32 0, %v1050
  %v1052 = vrot.slane %v1016, %v1051
  %v1054 = vmul.f32 %v1046, %v1052
  %v1055 = vmul.f32 %v1047, %v1052
  %v1057 = vlaneseq
  %v1058 = vshrl.u32 %v1057, 7
  %v1059 = vsub.s32 0, %v1058
  %v1060 = vrot.slane %v1017, %v1059
  %v1062 = vadd.f32 %v1054, %v1060
  %v1063 = vadd.f32 %v1055, %v1060
  %v1064 = vpack.c.bf16 %v1063, %v1062
  %s1065 = scalar_lea.vmem %s5, 64
  %v1066 = vld [vmem:[%s1065] sm:$0xff]
  %v1067 = vld [vmem:[%s1065 + $0x8] sm:$0xff]
  %v1068 = vld [vmem:[%s1065 + $0x10] sm:$0xff]
  %v1069 = vld [vmem:[%s1065 + $0x18] sm:$0xff]
  %v1070 = vld [vmem:[%s1065 + $0x20] sm:$0xff]
  %v1071 = vld [vmem:[%s1065 + $0x28] sm:$0xff]
  %v1072 = vld [vmem:[%s1065 + $0x30] sm:$0xff]
  %v1073 = vld [vmem:[%s1065 + $0x38] sm:$0xff]
  %s1074 = scalar_lea.vmem %s6, 2
  %v1075 = vld [vmem:[%s1074] sm:$0x3]
  %v1077 = vlaneseq
  %v1078 = vshrl.u32 %v1077, 7
  %v1079 = vsub.s32 0, %v1078
  %v1080 = vrot.slane %v1075, %v1079
  %v1081 = vlaneseq
  %v1082 = vshrl.u32 %v1081, 7
  %v1083 = vsub.s32 1, %v1082
  %v1084 = vrot.slane %v1075, %v1083
  %v1095 = vunpack.c.l.b16 %v1066
  %v1096 = vunpack.c.h.b16 %v1066
  %v1097 = vunpack.c.l.b16 %v1067
  %v1098 = vunpack.c.h.b16 %v1067
  %v1099 = vunpack.c.l.b16 %v1068
  %v1100 = vunpack.c.h.b16 %v1068
  %v1101 = vunpack.c.l.b16 %v1069
  %v1102 = vunpack.c.h.b16 %v1069
  %v1103 = vunpack.c.l.b16 %v1070
  %v1104 = vunpack.c.h.b16 %v1070
  %v1105 = vunpack.c.l.b16 %v1071
  %v1106 = vunpack.c.h.b16 %v1071
  %v1107 = vunpack.c.l.b16 %v1072
  %v1108 = vunpack.c.h.b16 %v1072
  %v1109 = vunpack.c.l.b16 %v1073
  %v1110 = vunpack.c.h.b16 %v1073
  %v1111 = vpack.c.b16 %v1097, %v1095
  %v1112 = vpack.c.b16 %v1098, %v1096
  %v1113 = vpack.c.b16 %v1101, %v1099
  %v1114 = vpack.c.b16 %v1102, %v1100
  %v1115 = vpack.c.b16 %v1105, %v1103
  %v1116 = vpack.c.b16 %v1106, %v1104
  %v1117 = vpack.c.b16 %v1109, %v1107
  %v1118 = vpack.c.b16 %v1110, %v1108
  %v1128 = vsel %vm262, %v1064, 0
  %1130 = vmatprep.subr.bf16.mxu0 %v1112
  %1131 = vmatpush1.bf16.msra.mxu0 %v1111
  %1132 = vmatprep.subr.bf16.mxu0 %v1114
  %1133 = vmatpush1.bf16.msra.mxu0 %v1113
  %1134 = vmatprep.subr.bf16.mxu0 %v1116
  %1135 = vmatpush1.bf16.msra.mxu0 %v1115
  %1136 = vmatprep.subr.bf16.mxu0 %v1118
  %1137 = vmatpush1.bf16.msra.mxu0 %v1117
  %1138 = vmatprep.subr.bf16.mxu0 0
  %1139 = vmatpush1.bf16.msra.mxu0 0
  %1140 = vmatprep.subr.bf16.mxu0 0
  %1141 = vmatpush1.bf16.msra.mxu0 0
  %1142 = vmatprep.subr.bf16.mxu0 0
  %1143 = vmatpush1.bf16.msra.mxu0 0
  %1144 = vmatprep.subr.bf16.mxu0 0
  %1145 = vmatpush1.bf16.msra.mxu0 0
  %1146 = vmatprep.subr.bf16.mxu0 0
  %1147 = vmatpush1.bf16.msra.mxu0 0
  %1148 = vmatprep.subr.bf16.mxu0 0
  %1149 = vmatpush1.bf16.msra.mxu0 0
  %1150 = vmatprep.subr.bf16.mxu0 0
  %1151 = vmatpush1.bf16.msra.mxu0 0
  %1152 = vmatprep.subr.bf16.mxu0 0
  %1153 = vmatpush1.bf16.msra.mxu0 0
  %1154 = vmatprep.subr.bf16.mxu0 0
  %1155 = vmatpush1.bf16.msra.mxu0 0
  %1156 = vmatprep.subr.bf16.mxu0 0
  %1157 = vmatpush1.bf16.msra.mxu0 0
  %1158 = vmatprep.subr.bf16.mxu0 0
  %1159 = vmatpush1.bf16.msra.mxu0 0
  %1160 = vmatprep.subr.bf16.mxu0 0
  %1161 = vmatpush1.bf16.msra.mxu0 0
  %1162 = vmatprep.mubr.bf16.mxu0 0
  %1163 = vmatmul.mubr.bf16.gmra.mrb[0].mxu0 %v1128
  %v1164 = vpop.f32.mrb[0].mxu0
  %v1165 = vadd.f32 %v1080, %v1164
  %v1166 = vpop.f32.mrb[0].mxu0
  %v1167 = vadd.f32 %v1084, %v1166
  %v1168 = vpop.f32.mrb[0].mxu0
  %v1169 = vadd.f32 %v1080, %v1168
  %v1170 = vpop.f32.mrb[0].mxu0
  %v1171 = vadd.f32 %v1084, %v1170
  %1172 = vdwg.mxu0
  %v1173 = vmul.f32 %v1165, %v193
  %v1174 = vmul.f32 %v1169, %v194
  %v1175 = vmul.f32 %v1165, %v195
  %v1176 = vmul.f32 %v1169, %v196
  %v1177 = vmul.f32 %v1165, %v197
  %v1178 = vmul.f32 %v1169, %v198
  %v1179 = vmul.f32 %v1165, %v199
  %v1180 = vmul.f32 %v1169, %v200
  %v1181 = vpack.c.bf16 %v1174, %v1173
  %v1182 = vpack.c.bf16 %v1176, %v1175
  %v1183 = vpack.c.bf16 %v1178, %v1177
  %v1184 = vpack.c.bf16 %v1180, %v1179
  %v1185 = vpack.c.bf16 %v1169, %v1165
  %1187 = vrot.lane.b32.xlu0 %v1185, 64
  %v1188 = vpop.permute.xlu0 %1187
  %v1190 = vsel %vm262, %v1181, 0
  %v1193 = vsel %vm262, %v1182, 0
  %v1196 = vsel %vm262, %v1183, 0
  %v1199 = vsel %vm262, %v1184, 0
  %v1202 = vsel %vm262, %v1188, 0
  %1204 = vmatprep.subr.bf16.mxu0 0
  %1205 = vmatpush1.bf16.xpose.msra.mxu0 %v1202
  %1206 = vmatprep.subr.bf16.mxu0 0
  %1207 = vmatpush1.bf16.xpose.msra.mxu0 0
  %1208 = vmatprep.subr.bf16.mxu0 0
  %1209 = vmatpush1.bf16.xpose.msra.mxu0 0
  %1210 = vmatprep.subr.bf16.mxu0 0
  %1211 = vmatpush1.bf16.xpose.msra.mxu0 0
  %1212 = vmatprep.subr.bf16.mxu0 0
  %1213 = vmatpush1.bf16.xpose.msra.mxu0 0
  %1214 = vmatprep.subr.bf16.mxu0 0
  %1215 = vmatpush1.bf16.xpose.msra.mxu0 0
  %1216 = vmatprep.subr.bf16.mxu0 0
  %1217 = vmatpush1.bf16.xpose.msra.mxu0 0
  %1218 = vmatprep.subr.bf16.mxu0 0
  %1219 = vmatpush1.bf16.xpose.msra.mxu0 0
  %1220 = vmatprep.subr.bf16.mxu0 0
  %1221 = vmatpush1.bf16.xpose.msra.mxu0 0
  %1222 = vmatprep.subr.bf16.mxu0 0
  %1223 = vmatpush1.bf16.xpose.msra.mxu0 0
  %1224 = vmatprep.subr.bf16.mxu0 0
  %1225 = vmatpush1.bf16.xpose.msra.mxu0 0
  %1226 = vmatprep.subr.bf16.mxu0 0
  %1227 = vmatpush1.bf16.xpose.msra.mxu0 0
  %1228 = vmatprep.subr.bf16.mxu0 0
  %1229 = vmatpush1.bf16.xpose.msra.mxu0 0
  %1230 = vmatprep.subr.bf16.mxu0 0
  %1231 = vmatpush1.bf16.xpose.msra.mxu0 0
  %1232 = vmatprep.subr.bf16.mxu0 0
  %1233 = vmatpush1.bf16.xpose.msra.mxu0 0
  %1234 = vmatprep.subr.bf16.mxu0 0
  %1235 = vmatpush1.bf16.xpose.msra.mxu0 0
  %1236 = vmatprep.mubr.bf16.mxu0 0
  %1237 = vmatmul.mubr.bf16.gmra.mrb[0].mxu0 %v1190
  %v1238 = vpop.f32.mrb[0].mxu0
  %v1239 = vadd.f32 %v185, %v1238
  %v1240 = vpop.f32.mrb[0].mxu0
  %v1241 = vpop.f32.mrb[0].mxu0
  %v1242 = vadd.f32 %v186, %v1241
  %v1243 = vpop.f32.mrb[0].mxu0
  %1244 = vmatprep.mubr.bf16.mxu0 0
  %1245 = vmatmul.mubr.bf16.gmra.mrb[0].mxu0 %v1193
  %v1246 = vpop.f32.mrb[0].mxu0
  %v1247 = vadd.f32 %v187, %v1246
  %v1248 = vpop.f32.mrb[0].mxu0
  %v1249 = vpop.f32.mrb[0].mxu0
  %v1250 = vadd.f32 %v188, %v1249
  %v1251 = vpop.f32.mrb[0].mxu0
  %1252 = vmatprep.mubr.bf16.mxu0 0
  %1253 = vmatmul.mubr.bf16.gmra.mrb[0].mxu0 %v1196
  %v1254 = vpop.f32.mrb[0].mxu0
  %v1255 = vadd.f32 %v189, %v1254
  %v1256 = vpop.f32.mrb[0].mxu0
  %v1257 = vpop.f32.mrb[0].mxu0
  %v1258 = vadd.f32 %v190, %v1257
  %v1259 = vpop.f32.mrb[0].mxu0
  %1260 = vmatprep.mubr.bf16.mxu0 0
  %1261 = vmatmul.mubr.bf16.gmra.mrb[0].mxu0 %v1199
  %v1262 = vpop.f32.mrb[0].mxu0
  %v1263 = vadd.f32 %v191, %v1262
  %v1264 = vpop.f32.mrb[0].mxu0
  %v1265 = vpop.f32.mrb[0].mxu0
  %v1266 = vadd.f32 %v192, %v1265
  %v1267 = vpop.f32.mrb[0].mxu0
  %1268 = vdwg.mxu0
  %v1269 = vsel %vm405, %v1239, -inf
  %1270 = vmax.xlane.f32.xlu0 %v1269
  %v1271 = vpop.xlane.xlu0 %1270
  %v1272 = vsel %vm405, %v1242, -inf
  %1273 = vmax.xlane.f32.xlu0 %v1272
  %v1274 = vpop.xlane.xlu0 %1273
  %v1275 = vsel %vm405, %v1247, -inf
  %1276 = vmax.xlane.f32.xlu0 %v1275
  %v1277 = vpop.xlane.xlu0 %1276
  %v1278 = vsel %vm405, %v1250, -inf
  %1279 = vmax.xlane.f32.xlu0 %v1278
  %v1280 = vpop.xlane.xlu0 %1279
  %v1281 = vsel %vm405, %v1255, -inf
  %1282 = vmax.xlane.f32.xlu0 %v1281
  %v1283 = vpop.xlane.xlu0 %1282
  %v1284 = vsel %vm405, %v1258, -inf
  %1285 = vmax.xlane.f32.xlu0 %v1284
  %v1286 = vpop.xlane.xlu0 %1285
  %v1287 = vsel %vm405, %v1263, -inf
  %1288 = vmax.xlane.f32.xlu0 %v1287
  %v1289 = vpop.xlane.xlu0 %1288
  %v1290 = vsel %vm405, %v1266, -inf
  %1291 = vmax.xlane.f32.xlu0 %v1290
  %v1292 = vpop.xlane.xlu0 %1291
  %v1293 = vsub.f32 %v1239, %v1271
  %v1294 = vsub.f32 %v1242, %v1274
  %v1295 = vsub.f32 %v1247, %v1277
  %v1296 = vsub.f32 %v1250, %v1280
  %v1297 = vsub.f32 %v1255, %v1283
  %v1298 = vsub.f32 %v1258, %v1286
  %v1299 = vsub.f32 %v1263, %v1289
  %v1300 = vsub.f32 %v1266, %v1292
  %v1301 = vmul.f32 %v1293, 1.442695
  %v1302 = vpow.pop %v1301
  %v1303 = vmul.f32 %v1294, 1.442695
  %v1304 = vpow.pop %v1303
  %v1305 = vmul.f32 %v1295, 1.442695
  %v1306 = vpow.pop %v1305
  %v1307 = vmul.f32 %v1296, 1.442695
  %v1308 = vpow.pop %v1307
  %v1309 = vmul.f32 %v1297, 1.442695
  %v1310 = vpow.pop %v1309
  %v1311 = vmul.f32 %v1298, 1.442695
  %v1312 = vpow.pop %v1311
  %v1313 = vmul.f32 %v1299, 1.442695
  %v1314 = vpow.pop %v1313
  %v1315 = vmul.f32 %v1300, 1.442695
  %v1316 = vpow.pop %v1315
  %v1317 = vsel %vm405, %v1302, 0.0
  %1318 = vadd.xlane.f32.xlu0 %v1317
  %v1319 = vpop.xlane.xlu0 %1318
  %v1320 = vsel %vm405, %v1304, 0.0
  %1321 = vadd.xlane.f32.xlu0 %v1320
  %v1322 = vpop.xlane.xlu0 %1321
  %v1323 = vsel %vm405, %v1306, 0.0
  %1324 = vadd.xlane.f32.xlu0 %v1323
  %v1325 = vpop.xlane.xlu0 %1324
  %v1326 = vsel %vm405, %v1308, 0.0
  %1327 = vadd.xlane.f32.xlu0 %v1326
  %v1328 = vpop.xlane.xlu0 %1327
  %v1329 = vsel %vm405, %v1310, 0.0
  %1330 = vadd.xlane.f32.xlu0 %v1329
  %v1331 = vpop.xlane.xlu0 %1330
  %v1332 = vsel %vm405, %v1312, 0.0
  %1333 = vadd.xlane.f32.xlu0 %v1332
  %v1334 = vpop.xlane.xlu0 %1333
  %v1335 = vsel %vm405, %v1314, 0.0
  %1336 = vadd.xlane.f32.xlu0 %v1335
  %v1337 = vpop.xlane.xlu0 %1336
  %v1338 = vsel %vm405, %v1316, 0.0
  %1339 = vadd.xlane.f32.xlu0 %v1338
  %v1340 = vpop.xlane.xlu0 %1339
  %v1341 = vrcp.pop %v1319
  %v1342 = vrcp.pop %v1322
  %v1343 = vrcp.pop %v1325
  %v1344 = vrcp.pop %v1328
  %v1345 = vrcp.pop %v1331
  %v1346 = vrcp.pop %v1334
  %v1347 = vrcp.pop %v1337
  %v1348 = vrcp.pop %v1340
  %v1349 = vmul.f32 %v1302, %v1341
  %v1350 = vmul.f32 %v1304, %v1342
  %v1351 = vmul.f32 %v1306, %v1343
  %v1352 = vmul.f32 %v1308, %v1344
  %v1353 = vmul.f32 %v1310, %v1345
  %v1354 = vmul.f32 %v1312, %v1346
  %v1355 = vmul.f32 %v1314, %v1347
  %v1356 = vmul.f32 %v1316, %v1348
  %v1357 = vpack.c.bf16 %v1350, %v1349
  %v1358 = vpack.c.bf16 %v1352, %v1351
  %v1359 = vpack.c.bf16 %v1354, %v1353
  %v1360 = vpack.c.bf16 %v1356, %v1355
  %v1361 = vpack.c.bf16 %v1171, %v1167
  %v1363 = vsel %vm405, %v1357, 0
  %v1366 = vsel %vm405, %v1358, 0
  %v1369 = vsel %vm405, %v1359, 0
  %v1372 = vsel %vm405, %v1360, 0
  %1374 = vmatprep.subr.bf16.mxu0 0
  %1375 = vmatpush1.bf16.msra.mxu0 %v1361
  %1376 = vmatprep.subr.bf16.mxu0 0
  %1377 = vmatpush1.bf16.msra.mxu0 0
  %1378 = vmatprep.subr.bf16.mxu0 0
  %1379 = vmatpush1.bf16.msra.mxu0 0
  %1380 = vmatprep.subr.bf16.mxu0 0
  %1381 = vmatpush1.bf16.msra.mxu0 0
  %1382 = vmatprep.subr.bf16.mxu0 0
  %1383 = vmatpush1.bf16.msra.mxu0 0
  %1384 = vmatprep.subr.bf16.mxu0 0
  %1385 = vmatpush1.bf16.msra.mxu0 0
  %1386 = vmatprep.subr.bf16.mxu0 0
  %1387 = vmatpush1.bf16.msra.mxu0 0
  %1388 = vmatprep.subr.bf16.mxu0 0
  %1389 = vmatpush1.bf16.msra.mxu0 0
  %1390 = vmatprep.subr.bf16.mxu0 0
  %1391 = vmatpush1.bf16.msra.mxu0 0
  %1392 = vmatprep.subr.bf16.mxu0 0
  %1393 = vmatpush1.bf16.msra.mxu0 0
  %1394 = vmatprep.subr.bf16.mxu0 0
  %1395 = vmatpush1.bf16.msra.mxu0 0
  %1396 = vmatprep.subr.bf16.mxu0 0
  %1397 = vmatpush1.bf16.msra.mxu0 0
  %1398 = vmatprep.subr.bf16.mxu0 0
  %1399 = vmatpush1.bf16.msra.mxu0 0
  %1400 = vmatprep.subr.bf16.mxu0 0
  %1401 = vmatpush1.bf16.msra.mxu0 0
  %1402 = vmatprep.subr.bf16.mxu0 0
  %1403 = vmatpush1.bf16.msra.mxu0 0
  %1404 = vmatprep.subr.bf16.mxu0 0
  %1405 = vmatpush1.bf16.msra.mxu0 0
  %1406 = vmatprep.mubr.bf16.mxu0 0
  %1407 = vmatmul.mubr.bf16.gmra.mrb[0].mxu0 %v1363
  %v1408 = vpop.f32.mrb[0].mxu0
  %v1409 = vadd.f32 0.0, %v1408
  %v1410 = vpop.f32.mrb[0].mxu0
  %v1411 = vpop.f32.mrb[0].mxu0
  %v1412 = vadd.f32 0.0, %v1411
  %v1413 = vpop.f32.mrb[0].mxu0
  %1414 = vmatprep.mubr.bf16.mxu0 0
  %1415 = vmatmul.mubr.bf16.gmra.mrb[0].mxu0 %v1366
  %v1416 = vpop.f32.mrb[0].mxu0
  %v1417 = vadd.f32 0.0, %v1416
  %v1418 = vpop.f32.mrb[0].mxu0
  %v1419 = vpop.f32.mrb[0].mxu0
  %v1420 = vadd.f32 0.0, %v1419
  %v1421 = vpop.f32.mrb[0].mxu0
  %1422 = vmatprep.mubr.bf16.mxu0 0
  %1423 = vmatmul.mubr.bf16.gmra.mrb[0].mxu0 %v1369
  %v1424 = vpop.f32.mrb[0].mxu0
  %v1425 = vadd.f32 0.0, %v1424
  %v1426 = vpop.f32.mrb[0].mxu0
  %v1427 = vpop.f32.mrb[0].mxu0
  %v1428 = vadd.f32 0.0, %v1427
  %v1429 = vpop.f32.mrb[0].mxu0
  %1430 = vmatprep.mubr.bf16.mxu0 0
  %1431 = vmatmul.mubr.bf16.gmra.mrb[0].mxu0 %v1372
  %v1432 = vpop.f32.mrb[0].mxu0
  %v1433 = vadd.f32 0.0, %v1432
  %v1434 = vpop.f32.mrb[0].mxu0
  %v1435 = vpop.f32.mrb[0].mxu0
  %v1436 = vadd.f32 0.0, %v1435
  %v1437 = vpop.f32.mrb[0].mxu0
  %1438 = vdwg.mxu0
  %v1439 = vmul.f32 %v1409, %v193
  %v1440 = vmul.f32 %v1412, %v194
  %v1441 = vmul.f32 %v1417, %v195
  %v1442 = vmul.f32 %v1420, %v196
  %v1443 = vmul.f32 %v1425, %v197
  %v1444 = vmul.f32 %v1428, %v198
  %v1445 = vmul.f32 %v1433, %v199
  %v1446 = vmul.f32 %v1436, %v200
  %v1447 = vadd.f32 %v1439, %v1441
  %v1448 = vadd.f32 %v1440, %v1442
  %v1449 = vadd.f32 %v1447, %v1443
  %v1450 = vadd.f32 %v1448, %v1444
  %v1451 = vadd.f32 %v1449, %v1445
  %v1452 = vadd.f32 %v1450, %v1446
  %v1453 = vpack.c.bf16 %v1452, %v1451
  %s1454 = scalar_lea.vmem %s7, 32
  %v1455 = vld [vmem:[%s1454] sm:$0xf]
  %v1456 = vld [vmem:[%s1454 + $0x4] sm:$0xf]
  %v1457 = vld [vmem:[%s1454 + $0x8] sm:$0xf]
  %v1458 = vld [vmem:[%s1454 + $0xc] sm:$0xf]
  %v1459 = vld [vmem:[%s1454 + $0x10] sm:$0xf]
  %v1460 = vld [vmem:[%s1454 + $0x14] sm:$0xf]
  %v1461 = vld [vmem:[%s1454 + $0x18] sm:$0xf]
  %v1462 = vld [vmem:[%s1454 + $0x1c] sm:$0xf]
  %s1463 = scalar_lea.vmem %s8, 1
  %v1464 = vld [vmem:[%s1463] sm:$0x1]
  %v1466 = vlaneseq
  %v1467 = vshrl.u32 %v1466, 7
  %v1468 = vsub.s32 0, %v1467
  %v1469 = vrot.slane %v1464, %v1468
  %v1479 = vunpack.c.l.b16 %v1455
  %v1480 = vunpack.c.l.b16 %v1456
  %v1481 = vunpack.c.l.b16 %v1457
  %v1482 = vunpack.c.l.b16 %v1458
  %v1483 = vunpack.c.l.b16 %v1459
  %v1484 = vunpack.c.l.b16 %v1460
  %v1485 = vunpack.c.l.b16 %v1461
  %v1486 = vunpack.c.l.b16 %v1462
  %v1487 = vpack.c.b16 %v1480, %v1479
  %v1488 = vpack.c.b16 %v1482, %v1481
  %v1489 = vpack.c.b16 %v1484, %v1483
  %v1490 = vpack.c.b16 %v1486, %v1485
  %v1496 = vsel %vm262, %v1453, 0
  %1498 = vmatprep.subr.bf16.mxu0 0
  %1499 = vmatpush1.bf16.msra.mxu0 %v1487
  %1500 = vmatprep.subr.bf16.mxu0 0
  %1501 = vmatpush1.bf16.msra.mxu0 %v1488
  %1502 = vmatprep.subr.bf16.mxu0 0
  %1503 = vmatpush1.bf16.msra.mxu0 %v1489
  %1504 = vmatprep.subr.bf16.mxu0 0
  %1505 = vmatpush1.bf16.msra.mxu0 %v1490
  %1506 = vmatprep.subr.bf16.mxu0 0
  %1507 = vmatpush1.bf16.msra.mxu0 0
  %1508 = vmatprep.subr.bf16.mxu0 0
  %1509 = vmatpush1.bf16.msra.mxu0 0
  %1510 = vmatprep.subr.bf16.mxu0 0
  %1511 = vmatpush1.bf16.msra.mxu0 0
  %1512 = vmatprep.subr.bf16.mxu0 0
  %1513 = vmatpush1.bf16.msra.mxu0 0
  %1514 = vmatprep.subr.bf16.mxu0 0
  %1515 = vmatpush1.bf16.msra.mxu0 0
  %1516 = vmatprep.subr.bf16.mxu0 0
  %1517 = vmatpush1.bf16.msra.mxu0 0
  %1518 = vmatprep.subr.bf16.mxu0 0
  %1519 = vmatpush1.bf16.msra.mxu0 0
  %1520 = vmatprep.subr.bf16.mxu0 0
  %1521 = vmatpush1.bf16.msra.mxu0 0
  %1522 = vmatprep.subr.bf16.mxu0 0
  %1523 = vmatpush1.bf16.msra.mxu0 0
  %1524 = vmatprep.subr.bf16.mxu0 0
  %1525 = vmatpush1.bf16.msra.mxu0 0
  %1526 = vmatprep.subr.bf16.mxu0 0
  %1527 = vmatpush1.bf16.msra.mxu0 0
  %1528 = vmatprep.subr.bf16.mxu0 0
  %1529 = vmatpush1.bf16.msra.mxu0 0
  %1530 = vmatprep.mubr.bf16.mxu0 0
  %1531 = vmatmul.mubr.bf16.gmra.mrb[0].mxu0 %v1496
  %v1532 = vpop.f32.mrb[0].mxu0
  %v1533 = vadd.f32 %v1469, %v1532
  %v1534 = vpop.f32.mrb[0].mxu0
  %v1535 = vpop.f32.mrb[0].mxu0
  %v1536 = vadd.f32 %v1469, %v1535
  %v1537 = vpop.f32.mrb[0].mxu0
  %1538 = vdwg.mxu0
  %v1539 = vadd.f32 %v1062, %v1533
  %v1540 = vadd.f32 %v1063, %v1536
  %s1541 = scalar_lea.vmem %s9, 1
  %v1542 = vld [vmem:[%s1541] sm:$0x1]
  %s1543 = scalar_lea.vmem %s10, 1
  %v1544 = vld [vmem:[%s1543] sm:$0x1]
  %v1545 = vsel %vm262, %v1539, 0.0
  %1546 = vadd.xlane.f32.xlu0 %v1545
  %v1547 = vpop.xlane.xlu0 %1546
  %v1548 = vsel %vm262, %v1540, 0.0
  %1549 = vadd.xlane.f32.xlu0 %v1548
  %v1550 = vpop.xlane.xlu0 %1549
  %v1551 = vmul.f32 %v1547, %v684
  %v1552 = vmul.f32 %v1550, %v684
  %v1553 = vmul.f32 %v1539, %v1539
  %v1554 = vmul.f32 %v1540, %v1540
  %v1555 = vsel %vm262, %v1553, 0.0
  %1556 = vadd.xlane.f32.xlu0 %v1555
  %v1557 = vpop.xlane.xlu0 %1556
  %v1558 = vsel %vm262, %v1554, 0.0
  %1559 = vadd.xlane.f32.xlu0 %v1558
  %v1560 = vpop.xlane.xlu0 %1559
  %v1561 = vmul.f32 %v1557, %v684
  %v1562 = vmul.f32 %v1560, %v684
  %v1563 = vmul.f32 %v1551, %v1551
  %v1564 = vmul.f32 %v1552, %v1552
  %v1565 = vsub.f32 %v1561, %v1563
  %v1566 = vsub.f32 %v1562, %v1564
  %v1567 = vsub.f32 %v1539, %v1551
  %v1568 = vsub.f32 %v1540, %v1552
  %v1569 = vadd.f32 %v1565, 1e-05
  %v1570 = vadd.f32 %v1566, 1e-05
  %v1571 = vrsqrt.pop %v1569
  %v1572 = vrsqrt.pop %v1570
  %v1573 = vmul.f32 %v1567, %v1571
  %v1574 = vmul.f32 %v1568, %v1572
  %v1576 = vlaneseq
  %v1577 = vshrl.u32 %v1576, 7
  %v1578 = vsub.s32 0, %v1577
  %v1579 = vrot.slane %v1542, %v1578
  %v1581 = vmul.f32 %v1573, %v1579
  %v1582 = vmul.f32 %v1574, %v1579
  %v1584 = vlaneseq
  %v1585 = vshrl.u32 %v1584, 7
  %v1586 = vsub.s32 0, %v1585
  %v1587 = vrot.slane %v1544, %v1586
  %v1589 = vadd.f32 %v1581, %v1587
  %v1590 = vadd.f32 %v1582, %v1587
  %v1591 = vpack.c.bf16 %v1590, %v1589
  %s1592 = scalar_lea.vmem %s11, 64
  %v1593 = vld [vmem:[%s1592] sm:$0xff]
  %v1594 = vld [vmem:[%s1592 + $0x8] sm:$0xff]
  %v1595 = vld [vmem:[%s1592 + $0x10] sm:$0xff]
  %v1596 = vld [vmem:[%s1592 + $0x18] sm:$0xff]
  %v1597 = vld [vmem:[%s1592 + $0x20] sm:$0xff]
  %v1598 = vld [vmem:[%s1592 + $0x28] sm:$0xff]
  %v1599 = vld [vmem:[%s1592 + $0x30] sm:$0xff]
  %v1600 = vld [vmem:[%s1592 + $0x38] sm:$0xff]
  %s1601 = scalar_lea.vmem %s12, 2
  %v1602 = vld [vmem:[%s1601] sm:$0x3]
  %v1604 = vlaneseq
  %v1605 = vshrl.u32 %v1604, 7
  %v1606 = vsub.s32 0, %v1605
  %v1607 = vrot.slane %v1602, %v1606
  %v1608 = vlaneseq
  %v1609 = vshrl.u32 %v1608, 7
  %v1610 = vsub.s32 1, %v1609
  %v1611 = vrot.slane %v1602, %v1610
  %v1622 = vunpack.c.l.b16 %v1593
  %v1623 = vunpack.c.h.b16 %v1593
  %v1624 = vunpack.c.l.b16 %v1594
  %v1625 = vunpack.c.h.b16 %v1594
  %v1626 = vunpack.c.l.b16 %v1595
  %v1627 = vunpack.c.h.b16 %v1595
  %v1628 = vunpack.c.l.b16 %v1596
  %v1629 = vunpack.c.h.b16 %v1596
  %v1630 = vunpack.c.l.b16 %v1597
  %v1631 = vunpack.c.h.b16 %v1597
  %v1632 = vunpack.c.l.b16 %v1598
  %v1633 = vunpack.c.h.b16 %v1598
  %v1634 = vunpack.c.l.b16 %v1599
  %v1635 = vunpack.c.h.b16 %v1599
  %v1636 = vunpack.c.l.b16 %v1600
  %v1637 = vunpack.c.h.b16 %v1600
  %v1638 = vpack.c.b16 %v1624, %v1622
  %v1639 = vpack.c.b16 %v1625, %v1623
  %v1640 = vpack.c.b16 %v1628, %v1626
  %v1641 = vpack.c.b16 %v1629, %v1627
  %v1642 = vpack.c.b16 %v1632, %v1630
  %v1643 = vpack.c.b16 %v1633, %v1631
  %v1644 = vpack.c.b16 %v1636, %v1634
  %v1645 = vpack.c.b16 %v1637, %v1635
  %v1655 = vsel %vm262, %v1591, 0
  %1657 = vmatprep.subr.bf16.mxu0 %v1639
  %1658 = vmatpush1.bf16.msra.mxu0 %v1638
  %1659 = vmatprep.subr.bf16.mxu0 %v1641
  %1660 = vmatpush1.bf16.msra.mxu0 %v1640
  %1661 = vmatprep.subr.bf16.mxu0 %v1643
  %1662 = vmatpush1.bf16.msra.mxu0 %v1642
  %1663 = vmatprep.subr.bf16.mxu0 %v1645
  %1664 = vmatpush1.bf16.msra.mxu0 %v1644
  %1665 = vmatprep.subr.bf16.mxu0 0
  %1666 = vmatpush1.bf16.msra.mxu0 0
  %1667 = vmatprep.subr.bf16.mxu0 0
  %1668 = vmatpush1.bf16.msra.mxu0 0
  %1669 = vmatprep.subr.bf16.mxu0 0
  %1670 = vmatpush1.bf16.msra.mxu0 0
  %1671 = vmatprep.subr.bf16.mxu0 0
  %1672 = vmatpush1.bf16.msra.mxu0 0
  %1673 = vmatprep.subr.bf16.mxu0 0
  %1674 = vmatpush1.bf16.msra.mxu0 0
  %1675 = vmatprep.subr.bf16.mxu0 0
  %1676 = vmatpush1.bf16.msra.mxu0 0
  %1677 = vmatprep.subr.bf16.mxu0 0
  %1678 = vmatpush1.bf16.msra.mxu0 0
  %1679 = vmatprep.subr.bf16.mxu0 0
  %1680 = vmatpush1.bf16.msra.mxu0 0
  %1681 = vmatprep.subr.bf16.mxu0 0
  %1682 = vmatpush1.bf16.msra.mxu0 0
  %1683 = vmatprep.subr.bf16.mxu0 0
  %1684 = vmatpush1.bf16.msra.mxu0 0
  %1685 = vmatprep.subr.bf16.mxu0 0
  %1686 = vmatpush1.bf16.msra.mxu0 0
  %1687 = vmatprep.subr.bf16.mxu0 0
  %1688 = vmatpush1.bf16.msra.mxu0 0
  %1689 = vmatprep.mubr.bf16.mxu0 0
  %1690 = vmatmul.mubr.bf16.gmra.mrb[0].mxu0 %v1655
  %v1691 = vpop.f32.mrb[0].mxu0
  %v1692 = vadd.f32 %v1607, %v1691
  %v1693 = vpop.f32.mrb[0].mxu0
  %v1694 = vadd.f32 %v1611, %v1693
  %v1695 = vpop.f32.mrb[0].mxu0
  %v1696 = vadd.f32 %v1607, %v1695
  %v1697 = vpop.f32.mrb[0].mxu0
  %v1698 = vadd.f32 %v1611, %v1697
  %1699 = vdwg.mxu0
  %v1700 = vmax.f32 %v1692, 0.0
  %v1701 = vmax.f32 %v1694, 0.0
  %v1702 = vmax.f32 %v1696, 0.0
  %v1703 = vmax.f32 %v1698, 0.0
  %v1704 = vpack.c.bf16 %v1702, %v1700
  %v1705 = vpack.c.bf16 %v1703, %v1701
  %s1706 = scalar_lea.vmem %s13, 128
  %v1707 = vld [vmem:[%s1706] sm:$0xf]
  %v1708 = vld [vmem:[%s1706 + $0x4] sm:$0xf]
  %v1709 = vld [vmem:[%s1706 + $0x8] sm:$0xf]
  %v1710 = vld [vmem:[%s1706 + $0xc] sm:$0xf]
  %v1711 = vld [vmem:[%s1706 + $0x10] sm:$0xf]
  %v1712 = vld [vmem:[%s1706 + $0x14] sm:$0xf]
  %v1713 = vld [vmem:[%s1706 + $0x18] sm:$0xf]
  %v1714 = vld [vmem:[%s1706 + $0x1c] sm:$0xf]
  %v1715 = vld [vmem:[%s1706 + $0x20] sm:$0xf]
  %v1716 = vld [vmem:[%s1706 + $0x24] sm:$0xf]
  %v1717 = vld [vmem:[%s1706 + $0x28] sm:$0xf]
  %v1718 = vld [vmem:[%s1706 + $0x2c] sm:$0xf]
  %v1719 = vld [vmem:[%s1706 + $0x30] sm:$0xf]
  %v1720 = vld [vmem:[%s1706 + $0x34] sm:$0xf]
  %v1721 = vld [vmem:[%s1706 + $0x38] sm:$0xf]
  %v1722 = vld [vmem:[%s1706 + $0x3c] sm:$0xf]
  %v1723 = vld [vmem:[%s1706 + $0x40] sm:$0xf]
  %v1724 = vld [vmem:[%s1706 + $0x44] sm:$0xf]
  %v1725 = vld [vmem:[%s1706 + $0x48] sm:$0xf]
  %v1726 = vld [vmem:[%s1706 + $0x4c] sm:$0xf]
  %v1727 = vld [vmem:[%s1706 + $0x50] sm:$0xf]
  %v1728 = vld [vmem:[%s1706 + $0x54] sm:$0xf]
  %v1729 = vld [vmem:[%s1706 + $0x58] sm:$0xf]
  %v1730 = vld [vmem:[%s1706 + $0x5c] sm:$0xf]
  %v1731 = vld [vmem:[%s1706 + $0x60] sm:$0xf]
  %v1732 = vld [vmem:[%s1706 + $0x64] sm:$0xf]
  %v1733 = vld [vmem:[%s1706 + $0x68] sm:$0xf]
  %v1734 = vld [vmem:[%s1706 + $0x6c] sm:$0xf]
  %v1735 = vld [vmem:[%s1706 + $0x70] sm:$0xf]
  %v1736 = vld [vmem:[%s1706 + $0x74] sm:$0xf]
  %v1737 = vld [vmem:[%s1706 + $0x78] sm:$0xf]
  %v1738 = vld [vmem:[%s1706 + $0x7c] sm:$0xf]
  %s1739 = scalar_lea.vmem %s14, 1
  %v1740 = vld [vmem:[%s1739] sm:$0x1]
  %v1742 = vlaneseq
  %v1743 = vshrl.u32 %v1742, 7
  %v1744 = vsub.s32 0, %v1743
  %v1745 = vrot.slane %v1740, %v1744
  %v1779 = vunpack.c.l.b16 %v1707
  %v1780 = vunpack.c.l.b16 %v1708
  %v1781 = vunpack.c.l.b16 %v1709
  %v1782 = vunpack.c.l.b16 %v1710
  %v1783 = vunpack.c.l.b16 %v1711
  %v1784 = vunpack.c.l.b16 %v1712
  %v1785 = vunpack.c.l.b16 %v1713
  %v1786 = vunpack.c.l.b16 %v1714
  %v1787 = vunpack.c.l.b16 %v1715
  %v1788 = vunpack.c.l.b16 %v1716
  %v1789 = vunpack.c.l.b16 %v1717
  %v1790 = vunpack.c.l.b16 %v1718
  %v1791 = vunpack.c.l.b16 %v1719
  %v1792 = vunpack.c.l.b16 %v1720
  %v1793 = vunpack.c.l.b16 %v1721
  %v1794 = vunpack.c.l.b16 %v1722
  %v1795 = vunpack.c.l.b16 %v1723
  %v1796 = vunpack.c.l.b16 %v1724
  %v1797 = vunpack.c.l.b16 %v1725
  %v1798 = vunpack.c.l.b16 %v1726
  %v1799 = vunpack.c.l.b16 %v1727
  %v1800 = vunpack.c.l.b16 %v1728
  %v1801 = vunpack.c.l.b16 %v1729
  %v1802 = vunpack.c.l.b16 %v1730
  %v1803 = vunpack.c.l.b16 %v1731
  %v1804 = vunpack.c.l.b16 %v1732
  %v1805 = vunpack.c.l.b16 %v1733
  %v1806 = vunpack.c.l.b16 %v1734
  %v1807 = vunpack.c.l.b16 %v1735
  %v1808 = vunpack.c.l.b16 %v1736
  %v1809 = vunpack.c.l.b16 %v1737
  %v1810 = vunpack.c.l.b16 %v1738
  %v1811 = vpack.c.b16 %v1780, %v1779
  %v1812 = vpack.c.b16 %v1782, %v1781
  %v1813 = vpack.c.b16 %v1784, %v1783
  %v1814 = vpack.c.b16 %v1786, %v1785
  %v1815 = vpack.c.b16 %v1788, %v1787
  %v1816 = vpack.c.b16 %v1790, %v1789
  %v1817 = vpack.c.b16 %v1792, %v1791
  %v1818 = vpack.c.b16 %v1794, %v1793
  %v1819 = vpack.c.b16 %v1796, %v1795
  %v1820 = vpack.c.b16 %v1798, %v1797
  %v1821 = vpack.c.b16 %v1800, %v1799
  %v1822 = vpack.c.b16 %v1802, %v1801
  %v1823 = vpack.c.b16 %v1804, %v1803
  %v1824 = vpack.c.b16 %v1806, %v1805
  %v1825 = vpack.c.b16 %v1808, %v1807
  %v1826 = vpack.c.b16 %v1810, %v1809
  %1843 = vmatprep.subr.bf16.mxu0 0
  %1844 = vmatpush1.bf16.msra.mxu0 %v1811
  %1845 = vmatprep.subr.bf16.mxu0 0
  %1846 = vmatpush1.bf16.msra.mxu0 %v1812
  %1847 = vmatprep.subr.bf16.mxu0 0
  %1848 = vmatpush1.bf16.msra.mxu0 %v1813
  %1849 = vmatprep.subr.bf16.mxu0 0
  %1850 = vmatpush1.bf16.msra.mxu0 %v1814
  %1851 = vmatprep.subr.bf16.mxu0 0
  %1852 = vmatpush1.bf16.msra.mxu0 %v1815
  %1853 = vmatprep.subr.bf16.mxu0 0
  %1854 = vmatpush1.bf16.msra.mxu0 %v1816
  %1855 = vmatprep.subr.bf16.mxu0 0
  %1856 = vmatpush1.bf16.msra.mxu0 %v1817
  %1857 = vmatprep.subr.bf16.mxu0 0
  %1858 = vmatpush1.bf16.msra.mxu0 %v1818
  %1859 = vmatprep.subr.bf16.mxu0 0
  %1860 = vmatpush1.bf16.msra.mxu0 %v1819
  %1861 = vmatprep.subr.bf16.mxu0 0
  %1862 = vmatpush1.bf16.msra.mxu0 %v1820
  %1863 = vmatprep.subr.bf16.mxu0 0
  %1864 = vmatpush1.bf16.msra.mxu0 %v1821
  %1865 = vmatprep.subr.bf16.mxu0 0
  %1866 = vmatpush1.bf16.msra.mxu0 %v1822
  %1867 = vmatprep.subr.bf16.mxu0 0
  %1868 = vmatpush1.bf16.msra.mxu0 %v1823
  %1869 = vmatprep.subr.bf16.mxu0 0
  %1870 = vmatpush1.bf16.msra.mxu0 %v1824
  %1871 = vmatprep.subr.bf16.mxu0 0
  %1872 = vmatpush1.bf16.msra.mxu0 %v1825
  %1873 = vmatprep.subr.bf16.mxu0 0
  %1874 = vmatpush1.bf16.msra.mxu0 %v1826
  %1875 = vmatprep.mubr.bf16.mxu0 %v1705
  %1876 = vmatmul.mubr.bf16.gmra.mrb[0].mxu0 %v1704
  %v1877 = vpop.f32.mrb[0].mxu0
  %v1878 = vadd.f32 %v1745, %v1877
  %v1879 = vpop.f32.mrb[0].mxu0
  %v1880 = vpop.f32.mrb[0].mxu0
  %v1881 = vadd.f32 %v1745, %v1880
  %v1882 = vpop.f32.mrb[0].mxu0
  %1883 = vdwg.mxu0
  %v1884 = vadd.f32 %v1589, %v1878
  %v1885 = vadd.f32 %v1590, %v1881
  %s1886 = scalar_lea.vmem %s15, 1
  %v1887 = vld [vmem:[%s1886] sm:$0x1]
  %s1888 = scalar_lea.vmem %s16, 1
  %v1889 = vld [vmem:[%s1888] sm:$0x1]
  %v1890 = vsel %vm262, %v1884, 0.0
  %1891 = vadd.xlane.f32.xlu0 %v1890
  %v1892 = vpop.xlane.xlu0 %1891
  %v1893 = vsel %vm262, %v1885, 0.0
  %1894 = vadd.xlane.f32.xlu0 %v1893
  %v1895 = vpop.xlane.xlu0 %1894
  %v1896 = vmul.f32 %v1892, %v684
  %v1897 = vmul.f32 %v1895, %v684
  %v1898 = vmul.f32 %v1884, %v1884
  %v1899 = vmul.f32 %v1885, %v1885
  %v1900 = vsel %vm262, %v1898, 0.0
  %1901 = vadd.xlane.f32.xlu0 %v1900
  %v1902 = vpop.xlane.xlu0 %1901
  %v1903 = vsel %vm262, %v1899, 0.0
  %1904 = vadd.xlane.f32.xlu0 %v1903
  %v1905 = vpop.xlane.xlu0 %1904
  %v1906 = vmul.f32 %v1902, %v684
  %v1907 = vmul.f32 %v1905, %v684
  %v1908 = vmul.f32 %v1896, %v1896
  %v1909 = vmul.f32 %v1897, %v1897
  %v1910 = vsub.f32 %v1906, %v1908
  %v1911 = vsub.f32 %v1907, %v1909
  %v1912 = vsub.f32 %v1884, %v1896
  %v1913 = vsub.f32 %v1885, %v1897
  %v1914 = vadd.f32 %v1910, 1e-05
  %v1915 = vadd.f32 %v1911, 1e-05
  %v1916 = vrsqrt.pop %v1914
  %v1917 = vrsqrt.pop %v1915
  %v1918 = vmul.f32 %v1912, %v1916
  %v1919 = vmul.f32 %v1913, %v1917
  %v1921 = vlaneseq
  %v1922 = vshrl.u32 %v1921, 7
  %v1923 = vsub.s32 0, %v1922
  %v1924 = vrot.slane %v1887, %v1923
  %v1926 = vmul.f32 %v1918, %v1924
  %v1927 = vmul.f32 %v1919, %v1924
  %v1929 = vlaneseq
  %v1930 = vshrl.u32 %v1929, 7
  %v1931 = vsub.s32 0, %v1930
  %v1932 = vrot.slane %v1889, %v1931
  %v1934 = vadd.f32 %v1926, %v1932
  %v1935 = vadd.f32 %v1927, %v1932
  %v1936 = vpack.c.bf16 %v1935, %v1934
  %v1937 = vld [vmem:[%s17] sm:$0xf]
  %v1938 = vld [vmem:[%s17 + $0x4] sm:$0xf]
  %v1939 = vld [vmem:[%s17 + $0x8] sm:$0xf]
  %v1940 = vld [vmem:[%s17 + $0xc] sm:$0xf]
  %v1941 = vld [vmem:[%s17 + $0x10] sm:$0xf]
  %v1942 = vld [vmem:[%s17 + $0x14] sm:$0xf]
  %v1943 = vld [vmem:[%s17 + $0x18] sm:$0xf]
  %v1944 = vld [vmem:[%s17 + $0x1c] sm:$0xf]
  %v1945 = vld [vmem:[%s18] sm:$0x1]
  %v1947 = vlaneseq
  %v1948 = vshrl.u32 %v1947, 7
  %v1949 = vsub.s32 0, %v1948
  %v1950 = vrot.slane %v1945, %v1949
  %v1960 = vunpack.c.l.b16 %v1937
  %v1961 = vunpack.c.l.b16 %v1938
  %v1962 = vunpack.c.l.b16 %v1939
  %v1963 = vunpack.c.l.b16 %v1940
  %v1964 = vunpack.c.l.b16 %v1941
  %v1965 = vunpack.c.l.b16 %v1942
  %v1966 = vunpack.c.l.b16 %v1943
  %v1967 = vunpack.c.l.b16 %v1944
  %v1968 = vpack.c.b16 %v1961, %v1960
  %v1969 = vpack.c.b16 %v1963, %v1962
  %v1970 = vpack.c.b16 %v1965, %v1964
  %v1971 = vpack.c.b16 %v1967, %v1966
  %v1977 = vsel %vm262, %v1936, 0
  %1979 = vmatprep.subr.bf16.mxu0 0
  %1980 = vmatpush1.bf16.msra.mxu0 %v1968
  %1981 = vmatprep.subr.bf16.mxu0 0
  %1982 = vmatpush1.bf16.msra.mxu0 %v1969
  %1983 = vmatprep.subr.bf16.mxu0 0
  %1984 = vmatpush1.bf16.msra.mxu0 %v1970
  %1985 = vmatprep.subr.bf16.mxu0 0
  %1986 = vmatpush1.bf16.msra.mxu0 %v1971
  %1987 = vmatprep.subr.bf16.mxu0 0
  %1988 = vmatpush1.bf16.msra.mxu0 0
  %1989 = vmatprep.subr.bf16.mxu0 0
  %1990 = vmatpush1.bf16.msra.mxu0 0
  %1991 = vmatprep.subr.bf16.mxu0 0
  %1992 = vmatpush1.bf16.msra.mxu0 0
  %1993 = vmatprep.subr.bf16.mxu0 0
  %1994 = vmatpush1.bf16.msra.mxu0 0
  %1995 = vmatprep.subr.bf16.mxu0 0
  %1996 = vmatpush1.bf16.msra.mxu0 0
  %1997 = vmatprep.subr.bf16.mxu0 0
  %1998 = vmatpush1.bf16.msra.mxu0 0
  %1999 = vmatprep.subr.bf16.mxu0 0
  %2000 = vmatpush1.bf16.msra.mxu0 0
  %2001 = vmatprep.subr.bf16.mxu0 0
  %2002 = vmatpush1.bf16.msra.mxu0 0
  %2003 = vmatprep.subr.bf16.mxu0 0
  %2004 = vmatpush1.bf16.msra.mxu0 0
  %2005 = vmatprep.subr.bf16.mxu0 0
  %2006 = vmatpush1.bf16.msra.mxu0 0
  %2007 = vmatprep.subr.bf16.mxu0 0
  %2008 = vmatpush1.bf16.msra.mxu0 0
  %2009 = vmatprep.subr.bf16.mxu0 0
  %2010 = vmatpush1.bf16.msra.mxu0 0
  %2011 = vmatprep.mubr.bf16.mxu0 0
  %2012 = vmatmul.mubr.bf16.gmra.mrb[0].mxu0 %v1977
  %v2013 = vpop.f32.mrb[0].mxu0
  %v2014 = vadd.f32 %v1950, %v2013
  %v2015 = vpop.f32.mrb[0].mxu0
  %v2016 = vpop.f32.mrb[0].mxu0
  %v2017 = vadd.f32 %v1950, %v2016
  %v2018 = vpop.f32.mrb[0].mxu0
  %2019 = vdwg.mxu0
  %2020 = vst [vmem:[%s19] sm:$0xff] %v2014
  %2021 = vst [vmem:[%s19 + $0x8] sm:$0xff] %v2017
  // Predicated region
  $region78: #{minigpt_forward.1} parent=0 // pred_check
    _
  $region79: #{minigpt_forward.1} parent=0 // pred_check_branch
    %2023 = sbr.rel (0) target = $region81
  $region80: #{minigpt_forward.1} parent=0 // pred_region
    _
  $region81: #{minigpt_forward.1} parent=0 // pred_fallthru
    _
  // Predicated region
  $region82: #{minigpt_forward.1} parent=0 // pred_check
    _
  $region83: #{minigpt_forward.1} parent=0 // pred_check_branch
    %2025 = sbr.rel (0) target = $region85
  $region84: #{minigpt_forward.1} parent=0 // pred_region
    _
  $region85: #{minigpt_forward.1} parent=0 // pred_fallthru
    _

</llo_original>
